<compile_context>
chip_gen: v7x
topology: tpu7x:2x2x1
jax: 0.10.0
libtpu: 0.0.40
codegen_flags: <defaults>
</compile_context>

<pallas_src>
import jax
import jax.numpy as jnp
from jax.experimental import pallas as pl
from jax.experimental.pallas import tpu as pltpu

d_model = 64
d_ff = 256
LN_EPS = 1e-5


def _ffn_kernel(x_ref, w1_ref, w2_ref, o_ref):
    # x_ref: (TM, d_model) in input dtype; w1_ref: (d_model, d_ff) bf16;
    # w2_ref: (d_ff, d_model) bf16.
    x = x_ref[...]
    x_f32 = x.astype(jnp.float32)       # residual / LayerNorm path stays f32

    # Linear 1 + ReLU: bf16 MXU operands, f32 accumulation.
    h = jnp.dot(x.astype(jnp.bfloat16), w1_ref[...],
                preferred_element_type=jnp.float32)
    h = jnp.maximum(h, 0.0)

    # Linear 2 (bf16 operands, f32 acc) + residual in f32.
    y = jnp.dot(h.astype(jnp.bfloat16), w2_ref[...],
                preferred_element_type=jnp.float32) + x_f32

    # LayerNorm over last dim, gamma=1 / beta=0 (fresh nn.LayerNorm each forward).
    mean = jnp.mean(y, axis=-1, keepdims=True)
    centered = y - mean
    var = jnp.mean(centered * centered, axis=-1, keepdims=True)
    o_ref[...] = (centered * jax.lax.rsqrt(var + LN_EPS)).astype(o_ref.dtype)


def poswise_ffn(x, w1, w2, *, tm=512):
    """x: [B, S, d_model]; w1: [d_model, d_ff]; w2: [d_ff, d_model]."""
    B, S, D = x.shape
    assert D == d_model
    N = B * S
    x2 = x.reshape(N, D)

    # Pad token count up to a multiple of the row tile (tail handling).
    n_tiles = pl.cdiv(N, tm)
    N_pad = n_tiles * tm
    if N_pad != N:
        x2 = jnp.pad(x2, ((0, N_pad - N), (0, 0)))

    # Store weights bf16 in HBM; they are fetched once and stay VMEM-resident.
    w1_bf = w1.astype(jnp.bfloat16)
    w2_bf = w2.astype(jnp.bfloat16)

    flops = 2 * N_pad * (D * d_ff + d_ff * D)
    bytes_accessed = (2 * N_pad * D * x.dtype.itemsize            # x in + out
                      + w1_bf.size * 2 + w2_bf.size * 2)          # bf16 weights

    out2 = pl.pallas_call(
        _ffn_kernel,
        out_shape=jax.ShapeDtypeStruct((N_pad, D), x.dtype),
        grid_spec=pltpu.PrefetchScalarGridSpec(
            num_scalar_prefetch=0,
            grid=(n_tiles,),
            in_specs=[
                pl.BlockSpec((tm, D), lambda i: (i, 0)),        # x row-tile
                pl.BlockSpec((D, d_ff), lambda i: (0, 0)),      # W1 (whole, resident)
                pl.BlockSpec((d_ff, D), lambda i: (0, 0)),      # W2 (whole, resident)
            ],
            out_specs=pl.BlockSpec((tm, D), lambda i: (i, 0)),
        ),
        compiler_params=pltpu.CompilerParams(
            dimension_semantics=("parallel",)),
        cost_estimate=pl.CostEstimate(
            flops=flops, transcendentals=N_pad, bytes_accessed=bytes_accessed),
    )(x2, w1_bf, w2_bf)

    return out2[:N].reshape(B, S, D)


def _reference(x, w1, w2):
    h = jnp.maximum(x.astype(jnp.float32) @ w1, 0.0)
    y = h @ w2 + x.astype(jnp.float32)
    mean = jnp.mean(y, axis=-1, keepdims=True)
    var = jnp.mean((y - mean) ** 2, axis=-1, keepdims=True)
    return (y - mean) * jax.lax.rsqrt(var + LN_EPS)


if __name__ == "__main__":
    key = jax.random.PRNGKey(0)
    k_x, k_w1, k_w2 = jax.random.split(key, 3)

    batch, seq = 2, 8
    x = jax.random.normal(k_x, (batch, seq, d_model), dtype=jnp.float32)

    # Deterministic synthetic weights (Kaiming-uniform-like scale of nn.Linear).
    bound1 = 1.0 / (d_model ** 0.5)
    bound2 = 1.0 / (d_ff ** 0.5)
    w1 = jax.random.uniform(k_w1, (d_model, d_ff), jnp.float32, -bound1, bound1)
    w2 = jax.random.uniform(k_w2, (d_ff, d_model), jnp.float32, -bound2, bound2)

    out = poswise_ffn(x, w1, w2)
    out = jax.block_until_ready(out)

    ref = _reference(x, w1, w2)
    assert out.shape == (batch, seq, d_model)
    # bf16 MXU operands (f32 accumulation) -> slightly looser tolerance.
    assert jnp.allclose(out, ref, atol=2e-2, rtol=2e-2)

    print("KERNEL_OK")
</pallas_src>

<mosaic_0001>
module attributes {stable_mosaic.version = 11 : i64} {
  func.func @_ffn_kernel(%arg0: i32, %arg1: memref<512x64xf32, #tpu.memory_space<vmem>>, %arg2: memref<64x256xbf16, #tpu.memory_space<vmem>>, %arg3: memref<256x64xbf16, #tpu.memory_space<vmem>>, %arg4: memref<512x64xf32, #tpu.memory_space<vmem>>) attributes {dimension_semantics = [#tpu.dimension_semantics<parallel>], iteration_bounds = array<i64: 1>, scalar_prefetch = 0 : i64, scratch_operands = 0 : i64, tpu.core_type = #tpu.core_type<tc>, window_params = [{transform_indices = @transform_0, window_bounds = array<i64: 512, 64>}, {pipeline_mode = #tpu.pipeline_mode<synchronous>, transform_indices = @transform_1, window_bounds = array<i64: 64, 256>}, {pipeline_mode = #tpu.pipeline_mode<synchronous>, transform_indices = @transform_2, window_bounds = array<i64: 256, 64>}, {transform_indices = @transform_3, window_bounds = array<i64: 512, 64>}]} {
    %c0 = arith.constant 0 : index
    %c0_0 = arith.constant 0 : index
    %0 = vector.load %arg1[%c0, %c0_0] : memref<512x64xf32, #tpu.memory_space<vmem>>, vector<512x64xf32>
    %1 = arith.truncf %0 : vector<512x64xf32> to vector<512x64xbf16>
    %c0_1 = arith.constant 0 : index
    %c0_2 = arith.constant 0 : index
    %2 = vector.load %arg2[%c0_1, %c0_2] : memref<64x256xbf16, #tpu.memory_space<vmem>>, vector<64x256xbf16>
    %cst = arith.constant dense<0.000000e+00> : vector<512x256xf32>
    %3 = tpu.matmul %1, %2, %cst {dimension_numbers = #tpu.dot_dimension_numbers<[1], [0], [0], [1], [0, 0, 1, 1], [], []>} : vector<512x64xbf16>, vector<64x256xbf16>, vector<512x256xf32> -> vector<512x256xf32>
    %cst_3 = arith.constant 0.000000e+00 : f32
    %4 = vector.broadcast %cst_3 : f32 to vector<512x256xf32>
    %5 = arith.maximumf %3, %4 : vector<512x256xf32>
    %6 = arith.truncf %5 : vector<512x256xf32> to vector<512x256xbf16>
    %c0_4 = arith.constant 0 : index
    %c0_5 = arith.constant 0 : index
    %7 = vector.load %arg3[%c0_4, %c0_5] : memref<256x64xbf16, #tpu.memory_space<vmem>>, vector<256x64xbf16>
    %cst_6 = arith.constant dense<0.000000e+00> : vector<512x64xf32>
    %8 = tpu.matmul %6, %7, %cst_6 {dimension_numbers = #tpu.dot_dimension_numbers<[1], [0], [0], [1], [0, 0, 1, 1], [], []>} : vector<512x256xbf16>, vector<256x64xbf16>, vector<512x64xf32> -> vector<512x64xf32>
    %9 = arith.addf %8, %0 : vector<512x64xf32>
    %cst_7 = arith.constant dense<0.000000e+00> : vector<512xf32>
    %10 = vector.multi_reduction <add>, %9, %cst_7 [1] : vector<512x64xf32> to vector<512xf32>
    %11 = vector.shape_cast %10 : vector<512xf32> to vector<512x1xf32>
    %cst_8 = arith.constant 6.400000e+01 : f32
    %12 = vector.broadcast %cst_8 : f32 to vector<512x1xf32>
    %13 = arith.divf %11, %12 : vector<512x1xf32>
    %14 = vector.broadcast %13 : vector<512x1xf32> to vector<512x64xf32>
    %15 = arith.subf %9, %14 : vector<512x64xf32>
    %16 = arith.mulf %15, %15 : vector<512x64xf32>
    %cst_9 = arith.constant dense<0.000000e+00> : vector<512xf32>
    %17 = vector.multi_reduction <add>, %16, %cst_9 [1] : vector<512x64xf32> to vector<512xf32>
    %18 = vector.shape_cast %17 : vector<512xf32> to vector<512x1xf32>
    %cst_10 = arith.constant 6.400000e+01 : f32
    %19 = vector.broadcast %cst_10 : f32 to vector<512x1xf32>
    %20 = arith.divf %18, %19 : vector<512x1xf32>
    %cst_11 = arith.constant 9.99999974E-6 : f32
    %21 = vector.broadcast %cst_11 : f32 to vector<512x1xf32>
    %22 = arith.addf %20, %21 : vector<512x1xf32>
    %23 = math.rsqrt %22 : vector<512x1xf32>
    %24 = vector.broadcast %23 : vector<512x1xf32> to vector<512x64xf32>
    %25 = arith.mulf %15, %24 : vector<512x64xf32>
    %c0_12 = arith.constant 0 : index
    %c0_13 = arith.constant 0 : index
    %26 = vector.load %arg4[%c0_12, %c0_13] : memref<512x64xf32, #tpu.memory_space<vmem>>, vector<512x64xf32>
    tpu.vector_store %arg4[%c0_12, %c0_13], %25 {strides = array<i32>} : memref<512x64xf32, #tpu.memory_space<vmem>>, vector<512x64xf32>,
    return
  }
  func.func @transform_0(%arg0: i32) -> (i32, i32) {
    %c0_i32 = arith.constant 0 : i32
    %c0_i32_0 = arith.constant 0 : i32
    return %arg0, %c0_i32 : i32, i32
  }
  func.func @transform_1(%arg0: i32) -> (i32, i32) {
    %c0_i32 = arith.constant 0 : i32
    %c0_i32_0 = arith.constant 0 : i32
    %c0_i32_1 = arith.constant 0 : i32
    return %c0_i32, %c0_i32_0 : i32, i32
  }
  func.func @transform_2(%arg0: i32) -> (i32, i32) {
    %c0_i32 = arith.constant 0 : i32
    %c0_i32_0 = arith.constant 0 : i32
    %c0_i32_1 = arith.constant 0 : i32
    return %c0_i32, %c0_i32_0 : i32, i32
  }
  func.func @transform_3(%arg0: i32) -> (i32, i32) {
    %c0_i32 = arith.constant 0 : i32
    %c0_i32_0 = arith.constant 0 : i32
    return %arg0, %c0_i32 : i32, i32
  }
}

</mosaic_0001>

<llo_original>
// kernel: tpu_custom_call.1
$region0: #{tpu_custom_call.1}
  #allocation0 [shape = 'u32[]', space=smem, size = 0x4, offset = 0x4, fixed_abs, tag = 'smem constant byte address 0x4 - core index']
  #allocation1 [shape = 'u32[144,128]{1,0:T(1,128)}', space=vmem, size = 0x12000, scoped, tag = 'internal scratch']
  %s0 = inlined_call_operand.vmem [shape: f32[512,64], index: 0, kind: input, shape index: {}]
  %s1 = inlined_call_operand.vmem [shape: bf16[64,256], index: 1, kind: input, shape index: {}]
  %s2 = inlined_call_operand.vmem [shape: bf16[256,64], index: 2, kind: input, shape index: {}]
  %s3 = inlined_call_operand.vmem [shape: f32[512,64], index: 3, kind: output, shape index: {}]
  %s4 = sld [smem:[#allocation0]]
  $region22: #{tpu_custom_call.1} parent=0
    _
  %s6 = ssub.s32 1, %s4
  %s7 = scalar_select 0, %s6, %s4
  // Predicated region
  $region2: #{tpu_custom_call.1} parent=0 // pred_check
    _
  $region3: #{tpu_custom_call.1} parent=0 // pred_check_branch
    %9 = sbr.rel (0) target = $region5
  $region4: #{tpu_custom_call.1} parent=0 // pred_region
    _
  $region5: #{tpu_custom_call.1} parent=0 // pred_fallthru
    _
  // Predicated region
  $region6: #{tpu_custom_call.1} parent=0 // pred_check
    _
  $region7: #{tpu_custom_call.1} parent=0 // pred_check_branch
    %11 = sbr.rel (0) target = $region9
  $region8: #{tpu_custom_call.1} parent=0 // pred_region
    _
  $region9: #{tpu_custom_call.1} parent=0 // pred_fallthru
    _
  // Predicated region
  $region10: #{tpu_custom_call.1} parent=0 // pred_check
    _
  $region11: #{tpu_custom_call.1} parent=0 // pred_check_branch
    %13 = sbr.rel (0) target = $region13
  $region12: #{tpu_custom_call.1} parent=0 // pred_region
    _
  $region13: #{tpu_custom_call.1} parent=0 // pred_fallthru
    _
  %v15 = vld [vmem:[%s0] sm:$0xff]
  %v16 = vld [vmem:[%s0 + $0x8] sm:$0xff]
  %v17 = vld [vmem:[%s0 + $0x10] sm:$0xff]
  %v18 = vld [vmem:[%s0 + $0x18] sm:$0xff]
  %v19 = vld [vmem:[%s0 + $0x20] sm:$0xff]
  %v20 = vld [vmem:[%s0 + $0x28] sm:$0xff]
  %v21 = vld [vmem:[%s0 + $0x30] sm:$0xff]
  %v22 = vld [vmem:[%s0 + $0x38] sm:$0xff]
  %v23 = vld [vmem:[%s0 + $0x40] sm:$0xff]
  %v24 = vld [vmem:[%s0 + $0x48] sm:$0xff]
  %v25 = vld [vmem:[%s0 + $0x50] sm:$0xff]
  %v26 = vld [vmem:[%s0 + $0x58] sm:$0xff]
  %v27 = vld [vmem:[%s0 + $0x60] sm:$0xff]
  %v28 = vld [vmem:[%s0 + $0x68] sm:$0xff]
  %v29 = vld [vmem:[%s0 + $0x70] sm:$0xff]
  %v30 = vld [vmem:[%s0 + $0x78] sm:$0xff]
  %v31 = vld [vmem:[%s0 + $0x80] sm:$0xff]
  %v32 = vld [vmem:[%s0 + $0x88] sm:$0xff]
  %v33 = vld [vmem:[%s0 + $0x90] sm:$0xff]
  %v34 = vld [vmem:[%s0 + $0x98] sm:$0xff]
  %v35 = vld [vmem:[%s0 + $0xa0] sm:$0xff]
  %v36 = vld [vmem:[%s0 + $0xa8] sm:$0xff]
  %v37 = vld [vmem:[%s0 + $0xb0] sm:$0xff]
  %v38 = vld [vmem:[%s0 + $0xb8] sm:$0xff]
  %v39 = vld [vmem:[%s0 + $0xc0] sm:$0xff]
  %v40 = vld [vmem:[%s0 + $0xc8] sm:$0xff]
  %v41 = vld [vmem:[%s0 + $0xd0] sm:$0xff]
  %v42 = vld [vmem:[%s0 + $0xd8] sm:$0xff]
  %v43 = vld [vmem:[%s0 + $0xe0] sm:$0xff]
  %v44 = vld [vmem:[%s0 + $0xe8] sm:$0xff]
  %v45 = vld [vmem:[%s0 + $0xf0] sm:$0xff]
  %v46 = vld [vmem:[%s0 + $0xf8] sm:$0xff]
  %v47 = vld [vmem:[%s0 + $0x100] sm:$0xff]
  %v48 = vld [vmem:[%s0 + $0x108] sm:$0xff]
  %v49 = vld [vmem:[%s0 + $0x110] sm:$0xff]
  %v50 = vld [vmem:[%s0 + $0x118] sm:$0xff]
  %v51 = vld [vmem:[%s0 + $0x120] sm:$0xff]
  %v52 = vld [vmem:[%s0 + $0x128] sm:$0xff]
  %v53 = vld [vmem:[%s0 + $0x130] sm:$0xff]
  %v54 = vld [vmem:[%s0 + $0x138] sm:$0xff]
  %v55 = vld [vmem:[%s0 + $0x140] sm:$0xff]
  %v56 = vld [vmem:[%s0 + $0x148] sm:$0xff]
  %v57 = vld [vmem:[%s0 + $0x150] sm:$0xff]
  %v58 = vld [vmem:[%s0 + $0x158] sm:$0xff]
  %v59 = vld [vmem:[%s0 + $0x160] sm:$0xff]
  %v60 = vld [vmem:[%s0 + $0x168] sm:$0xff]
  %v61 = vld [vmem:[%s0 + $0x170] sm:$0xff]
  %v62 = vld [vmem:[%s0 + $0x178] sm:$0xff]
  %v63 = vld [vmem:[%s0 + $0x180] sm:$0xff]
  %v64 = vld [vmem:[%s0 + $0x188] sm:$0xff]
  %v65 = vld [vmem:[%s0 + $0x190] sm:$0xff]
  %v66 = vld [vmem:[%s0 + $0x198] sm:$0xff]
  %v67 = vld [vmem:[%s0 + $0x1a0] sm:$0xff]
  %v68 = vld [vmem:[%s0 + $0x1a8] sm:$0xff]
  %v69 = vld [vmem:[%s0 + $0x1b0] sm:$0xff]
  %v70 = vld [vmem:[%s0 + $0x1b8] sm:$0xff]
  %v71 = vld [vmem:[%s0 + $0x1c0] sm:$0xff]
  %v72 = vld [vmem:[%s0 + $0x1c8] sm:$0xff]
  %v73 = vld [vmem:[%s0 + $0x1d0] sm:$0xff]
  %v74 = vld [vmem:[%s0 + $0x1d8] sm:$0xff]
  %v75 = vld [vmem:[%s0 + $0x1e0] sm:$0xff]
  %v76 = vld [vmem:[%s0 + $0x1e8] sm:$0xff]
  %v77 = vld [vmem:[%s0 + $0x1f0] sm:$0xff]
  %v78 = vld [vmem:[%s0 + $0x1f8] sm:$0xff]
  %v79 = vpack.c.bf16 %v16, %v15
  %v80 = vpack.c.bf16 %v18, %v17
  %v81 = vpack.c.bf16 %v20, %v19
  %v82 = vpack.c.bf16 %v22, %v21
  %v83 = vpack.c.bf16 %v24, %v23
  %v84 = vpack.c.bf16 %v26, %v25
  %v85 = vpack.c.bf16 %v28, %v27
  %v86 = vpack.c.bf16 %v30, %v29
  %v87 = vpack.c.bf16 %v32, %v31
  %v88 = vpack.c.bf16 %v34, %v33
  %v89 = vpack.c.bf16 %v36, %v35
  %v90 = vpack.c.bf16 %v38, %v37
  %v91 = vpack.c.bf16 %v40, %v39
  %v92 = vpack.c.bf16 %v42, %v41
  %v93 = vpack.c.bf16 %v44, %v43
  %v94 = vpack.c.bf16 %v46, %v45
  %v95 = vpack.c.bf16 %v48, %v47
  %v96 = vpack.c.bf16 %v50, %v49
  %v97 = vpack.c.bf16 %v52, %v51
  %v98 = vpack.c.bf16 %v54, %v53
  %v99 = vpack.c.bf16 %v56, %v55
  %v100 = vpack.c.bf16 %v58, %v57
  %v101 = vpack.c.bf16 %v60, %v59
  %v102 = vpack.c.bf16 %v62, %v61
  %v103 = vpack.c.bf16 %v64, %v63
  %v104 = vpack.c.bf16 %v66, %v65
  %v105 = vpack.c.bf16 %v68, %v67
  %v106 = vpack.c.bf16 %v70, %v69
  %v107 = vpack.c.bf16 %v72, %v71
  %v108 = vpack.c.bf16 %v74, %v73
  %v109 = vpack.c.bf16 %v76, %v75
  %v110 = vpack.c.bf16 %v78, %v77
  %v111 = vld [vmem:[%s1] sm:$0xff]
  %v112 = vld [vmem:[%s1 + $0x8] sm:$0xff]
  %v113 = vld [vmem:[%s1 + $0x10] sm:$0xff]
  %v114 = vld [vmem:[%s1 + $0x18] sm:$0xff]
  %v115 = vld [vmem:[%s1 + $0x20] sm:$0xff]
  %v116 = vld [vmem:[%s1 + $0x28] sm:$0xff]
  %v117 = vld [vmem:[%s1 + $0x30] sm:$0xff]
  %v118 = vld [vmem:[%s1 + $0x38] sm:$0xff]
  %v127 = vunpack.c.l.b16 %v111
  %v128 = vunpack.c.h.b16 %v111
  %v129 = vunpack.c.l.b16 %v112
  %v130 = vunpack.c.h.b16 %v112
  %v131 = vunpack.c.l.b16 %v113
  %v132 = vunpack.c.h.b16 %v113
  %v133 = vunpack.c.l.b16 %v114
  %v134 = vunpack.c.h.b16 %v114
  %v135 = vunpack.c.l.b16 %v115
  %v136 = vunpack.c.h.b16 %v115
  %v137 = vunpack.c.l.b16 %v116
  %v138 = vunpack.c.h.b16 %v116
  %v139 = vunpack.c.l.b16 %v117
  %v140 = vunpack.c.h.b16 %v117
  %v141 = vunpack.c.l.b16 %v118
  %v142 = vunpack.c.h.b16 %v118
  %v143 = vpack.c.b16 %v129, %v127
  %v144 = vpack.c.b16 %v130, %v128
  %v145 = vpack.c.b16 %v133, %v131
  %v146 = vpack.c.b16 %v134, %v132
  %v147 = vpack.c.b16 %v137, %v135
  %v148 = vpack.c.b16 %v138, %v136
  %v149 = vpack.c.b16 %v141, %v139
  %v150 = vpack.c.b16 %v142, %v140
  %vm159 = vcmask 523264
  %v161 = vsel %vm159, %v79, 0
  %v164 = vsel %vm159, %v80, 0
  %v167 = vsel %vm159, %v81, 0
  %v170 = vsel %vm159, %v82, 0
  %v173 = vsel %vm159, %v83, 0
  %v176 = vsel %vm159, %v84, 0
  %v179 = vsel %vm159, %v85, 0
  %v182 = vsel %vm159, %v86, 0
  %v185 = vsel %vm159, %v87, 0
  %v188 = vsel %vm159, %v88, 0
  %v191 = vsel %vm159, %v89, 0
  %v194 = vsel %vm159, %v90, 0
  %v197 = vsel %vm159, %v91, 0
  %v200 = vsel %vm159, %v92, 0
  %v203 = vsel %vm159, %v93, 0
  %v206 = vsel %vm159, %v94, 0
  %v209 = vsel %vm159, %v95, 0
  %v212 = vsel %vm159, %v96, 0
  %v215 = vsel %vm159, %v97, 0
  %v218 = vsel %vm159, %v98, 0
  %v221 = vsel %vm159, %v99, 0
  %v224 = vsel %vm159, %v100, 0
  %v227 = vsel %vm159, %v101, 0
  %v230 = vsel %vm159, %v102, 0
  %v233 = vsel %vm159, %v103, 0
  %v236 = vsel %vm159, %v104, 0
  %v239 = vsel %vm159, %v105, 0
  %v242 = vsel %vm159, %v106, 0
  %v245 = vsel %vm159, %v107, 0
  %v248 = vsel %vm159, %v108, 0
  %v251 = vsel %vm159, %v109, 0
  %v254 = vsel %vm159, %v110, 0
  %256 = vmatprep.subr.bf16.mxu0 %v144
  %257 = vmatpush1.bf16.msra.mxu0 %v143
  %258 = vmatprep.subr.bf16.mxu0 %v146
  %259 = vmatpush1.bf16.msra.mxu0 %v145
  %260 = vmatprep.subr.bf16.mxu0 %v148
  %261 = vmatpush1.bf16.msra.mxu0 %v147
  %262 = vmatprep.subr.bf16.mxu0 %v150
  %263 = vmatpush1.bf16.msra.mxu0 %v149
  %264 = vmatprep.subr.bf16.mxu0 0
  %265 = vmatpush1.bf16.msra.mxu0 0
  %266 = vmatprep.subr.bf16.mxu0 0
  %267 = vmatpush1.bf16.msra.mxu0 0
  %268 = vmatprep.subr.bf16.mxu0 0
  %269 = vmatpush1.bf16.msra.mxu0 0
  %270 = vmatprep.subr.bf16.mxu0 0
  %271 = vmatpush1.bf16.msra.mxu0 0
  %272 = vmatprep.subr.bf16.mxu0 0
  %273 = vmatpush1.bf16.msra.mxu0 0
  %274 = vmatprep.subr.bf16.mxu0 0
  %275 = vmatpush1.bf16.msra.mxu0 0
  %276 = vmatprep.subr.bf16.mxu0 0
  %277 = vmatpush1.bf16.msra.mxu0 0
  %278 = vmatprep.subr.bf16.mxu0 0
  %279 = vmatpush1.bf16.msra.mxu0 0
  %280 = vmatprep.subr.bf16.mxu0 0
  %281 = vmatpush1.bf16.msra.mxu0 0
  %282 = vmatprep.subr.bf16.mxu0 0
  %283 = vmatpush1.bf16.msra.mxu0 0
  %284 = vmatprep.subr.bf16.mxu0 0
  %285 = vmatpush1.bf16.msra.mxu0 0
  %286 = vmatprep.subr.bf16.mxu0 0
  %287 = vmatpush1.bf16.msra.mxu0 0
  %288 = vmatprep.mubr.bf16.mxu0 0
  %289 = vmatmul.mubr.bf16.gmra.mrb[0].mxu0 %v161
  %v290 = vpop.f32.mrb[0].mxu0
  %v291 = vadd.f32 0.0, %v290
  %v292 = vpop.f32.mrb[0].mxu0
  %v293 = vadd.f32 0.0, %v292
  %v294 = vpop.f32.mrb[0].mxu0
  %v295 = vadd.f32 0.0, %v294
  %v296 = vpop.f32.mrb[0].mxu0
  %v297 = vadd.f32 0.0, %v296
  %298 = vmatprep.mubr.bf16.mxu0 0
  %299 = vmatmul.mubr.bf16.gmra.mrb[0].mxu0 %v164
  %v300 = vpop.f32.mrb[0].mxu0
  %v301 = vadd.f32 0.0, %v300
  %v302 = vpop.f32.mrb[0].mxu0
  %v303 = vadd.f32 0.0, %v302
  %v304 = vpop.f32.mrb[0].mxu0
  %v305 = vadd.f32 0.0, %v304
  %v306 = vpop.f32.mrb[0].mxu0
  %v307 = vadd.f32 0.0, %v306
  %308 = vmatprep.mubr.bf16.mxu0 0
  %309 = vmatmul.mubr.bf16.gmra.mrb[0].mxu0 %v167
  %v310 = vpop.f32.mrb[0].mxu0
  %v311 = vadd.f32 0.0, %v310
  %v312 = vpop.f32.mrb[0].mxu0
  %v313 = vadd.f32 0.0, %v312
  %v314 = vpop.f32.mrb[0].mxu0
  %v315 = vadd.f32 0.0, %v314
  %v316 = vpop.f32.mrb[0].mxu0
  %v317 = vadd.f32 0.0, %v316
  %318 = vmatprep.mubr.bf16.mxu0 0
  %319 = vmatmul.mubr.bf16.gmra.mrb[0].mxu0 %v170
  %v320 = vpop.f32.mrb[0].mxu0
  %v321 = vadd.f32 0.0, %v320
  %v322 = vpop.f32.mrb[0].mxu0
  %v323 = vadd.f32 0.0, %v322
  %v324 = vpop.f32.mrb[0].mxu0
  %v325 = vadd.f32 0.0, %v324
  %v326 = vpop.f32.mrb[0].mxu0
  %v327 = vadd.f32 0.0, %v326
  %328 = vmatprep.mubr.bf16.mxu0 0
  %329 = vmatmul.mubr.bf16.gmra.mrb[0].mxu0 %v173
  %v330 = vpop.f32.mrb[0].mxu0
  %v331 = vadd.f32 0.0, %v330
  %v332 = vpop.f32.mrb[0].mxu0
  %v333 = vadd.f32 0.0, %v332
  %v334 = vpop.f32.mrb[0].mxu0
  %v335 = vadd.f32 0.0, %v334
  %v336 = vpop.f32.mrb[0].mxu0
  %v337 = vadd.f32 0.0, %v336
  %338 = vmatprep.mubr.bf16.mxu0 0
  %339 = vmatmul.mubr.bf16.gmra.mrb[0].mxu0 %v176
  %v340 = vpop.f32.mrb[0].mxu0
  %v341 = vadd.f32 0.0, %v340
  %v342 = vpop.f32.mrb[0].mxu0
  %v343 = vadd.f32 0.0, %v342
  %v344 = vpop.f32.mrb[0].mxu0
  %v345 = vadd.f32 0.0, %v344
  %v346 = vpop.f32.mrb[0].mxu0
  %v347 = vadd.f32 0.0, %v346
  %348 = vmatprep.mubr.bf16.mxu0 0
  %349 = vmatmul.mubr.bf16.gmra.mrb[0].mxu0 %v179
  %v350 = vpop.f32.mrb[0].mxu0
  %v351 = vadd.f32 0.0, %v350
  %v352 = vpop.f32.mrb[0].mxu0
  %v353 = vadd.f32 0.0, %v352
  %v354 = vpop.f32.mrb[0].mxu0
  %v355 = vadd.f32 0.0, %v354
  %v356 = vpop.f32.mrb[0].mxu0
  %v357 = vadd.f32 0.0, %v356
  %358 = vmatprep.mubr.bf16.mxu0 0
  %359 = vmatmul.mubr.bf16.gmra.mrb[0].mxu0 %v182
  %v360 = vpop.f32.mrb[0].mxu0
  %v361 = vadd.f32 0.0, %v360
  %v362 = vpop.f32.mrb[0].mxu0
  %v363 = vadd.f32 0.0, %v362
  %v364 = vpop.f32.mrb[0].mxu0
  %v365 = vadd.f32 0.0, %v364
  %v366 = vpop.f32.mrb[0].mxu0
  %v367 = vadd.f32 0.0, %v366
  %368 = vmatprep.mubr.bf16.mxu0 0
  %369 = vmatmul.mubr.bf16.gmra.mrb[0].mxu0 %v185
  %v370 = vpop.f32.mrb[0].mxu0
  %v371 = vadd.f32 0.0, %v370
  %v372 = vpop.f32.mrb[0].mxu0
  %v373 = vadd.f32 0.0, %v372
  %v374 = vpop.f32.mrb[0].mxu0
  %v375 = vadd.f32 0.0, %v374
  %v376 = vpop.f32.mrb[0].mxu0
  %v377 = vadd.f32 0.0, %v376
  %378 = vmatprep.mubr.bf16.mxu0 0
  %379 = vmatmul.mubr.bf16.gmra.mrb[0].mxu0 %v188
  %v380 = vpop.f32.mrb[0].mxu0
  %v381 = vadd.f32 0.0, %v380
  %v382 = vpop.f32.mrb[0].mxu0
  %v383 = vadd.f32 0.0, %v382
  %v384 = vpop.f32.mrb[0].mxu0
  %v385 = vadd.f32 0.0, %v384
  %v386 = vpop.f32.mrb[0].mxu0
  %v387 = vadd.f32 0.0, %v386
  %388 = vmatprep.mubr.bf16.mxu0 0
  %389 = vmatmul.mubr.bf16.gmra.mrb[0].mxu0 %v191
  %v390 = vpop.f32.mrb[0].mxu0
  %v391 = vadd.f32 0.0, %v390
  %v392 = vpop.f32.mrb[0].mxu0
  %v393 = vadd.f32 0.0, %v392
  %v394 = vpop.f32.mrb[0].mxu0
  %v395 = vadd.f32 0.0, %v394
  %v396 = vpop.f32.mrb[0].mxu0
  %v397 = vadd.f32 0.0, %v396
  %398 = vmatprep.mubr.bf16.mxu0 0
  %399 = vmatmul.mubr.bf16.gmra.mrb[0].mxu0 %v194
  %v400 = vpop.f32.mrb[0].mxu0
  %v401 = vadd.f32 0.0, %v400
  %v402 = vpop.f32.mrb[0].mxu0
  %v403 = vadd.f32 0.0, %v402
  %v404 = vpop.f32.mrb[0].mxu0
  %v405 = vadd.f32 0.0, %v404
  %v406 = vpop.f32.mrb[0].mxu0
  %v407 = vadd.f32 0.0, %v406
  %408 = vmatprep.mubr.bf16.mxu0 0
  %409 = vmatmul.mubr.bf16.gmra.mrb[0].mxu0 %v197
  %v410 = vpop.f32.mrb[0].mxu0
  %v411 = vadd.f32 0.0, %v410
  %v412 = vpop.f32.mrb[0].mxu0
  %v413 = vadd.f32 0.0, %v412
  %v414 = vpop.f32.mrb[0].mxu0
  %v415 = vadd.f32 0.0, %v414
  %v416 = vpop.f32.mrb[0].mxu0
  %v417 = vadd.f32 0.0, %v416
  %418 = vmatprep.mubr.bf16.mxu0 0
  %419 = vmatmul.mubr.bf16.gmra.mrb[0].mxu0 %v200
  %v420 = vpop.f32.mrb[0].mxu0
  %v421 = vadd.f32 0.0, %v420
  %v422 = vpop.f32.mrb[0].mxu0
  %v423 = vadd.f32 0.0, %v422
  %v424 = vpop.f32.mrb[0].mxu0
  %v425 = vadd.f32 0.0, %v424
  %v426 = vpop.f32.mrb[0].mxu0
  %v427 = vadd.f32 0.0, %v426
  %428 = vmatprep.mubr.bf16.mxu0 0
  %429 = vmatmul.mubr.bf16.gmra.mrb[0].mxu0 %v203
  %v430 = vpop.f32.mrb[0].mxu0
  %v431 = vadd.f32 0.0, %v430
  %v432 = vpop.f32.mrb[0].mxu0
  %v433 = vadd.f32 0.0, %v432
  %v434 = vpop.f32.mrb[0].mxu0
  %v435 = vadd.f32 0.0, %v434
  %v436 = vpop.f32.mrb[0].mxu0
  %v437 = vadd.f32 0.0, %v436
  %438 = vmatprep.mubr.bf16.mxu0 0
  %439 = vmatmul.mubr.bf16.gmra.mrb[0].mxu0 %v206
  %v440 = vpop.f32.mrb[0].mxu0
  %v441 = vadd.f32 0.0, %v440
  %v442 = vpop.f32.mrb[0].mxu0
  %v443 = vadd.f32 0.0, %v442
  %v444 = vpop.f32.mrb[0].mxu0
  %v445 = vadd.f32 0.0, %v444
  %v446 = vpop.f32.mrb[0].mxu0
  %v447 = vadd.f32 0.0, %v446
  %448 = vmatprep.mubr.bf16.mxu0 0
  %449 = vmatmul.mubr.bf16.gmra.mrb[0].mxu0 %v209
  %v450 = vpop.f32.mrb[0].mxu0
  %v451 = vadd.f32 0.0, %v450
  %v452 = vpop.f32.mrb[0].mxu0
  %v453 = vadd.f32 0.0, %v452
  %v454 = vpop.f32.mrb[0].mxu0
  %v455 = vadd.f32 0.0, %v454
  %v456 = vpop.f32.mrb[0].mxu0
  %v457 = vadd.f32 0.0, %v456
  %458 = vmatprep.mubr.bf16.mxu0 0
  %459 = vmatmul.mubr.bf16.gmra.mrb[0].mxu0 %v212
  %v460 = vpop.f32.mrb[0].mxu0
  %v461 = vadd.f32 0.0, %v460
  %v462 = vpop.f32.mrb[0].mxu0
  %v463 = vadd.f32 0.0, %v462
  %v464 = vpop.f32.mrb[0].mxu0
  %v465 = vadd.f32 0.0, %v464
  %v466 = vpop.f32.mrb[0].mxu0
  %v467 = vadd.f32 0.0, %v466
  %468 = vmatprep.mubr.bf16.mxu0 0
  %469 = vmatmul.mubr.bf16.gmra.mrb[0].mxu0 %v215
  %v470 = vpop.f32.mrb[0].mxu0
  %v471 = vadd.f32 0.0, %v470
  %v472 = vpop.f32.mrb[0].mxu0
  %v473 = vadd.f32 0.0, %v472
  %v474 = vpop.f32.mrb[0].mxu0
  %v475 = vadd.f32 0.0, %v474
  %v476 = vpop.f32.mrb[0].mxu0
  %v477 = vadd.f32 0.0, %v476
  %478 = vmatprep.mubr.bf16.mxu0 0
  %479 = vmatmul.mubr.bf16.gmra.mrb[0].mxu0 %v218
  %v480 = vpop.f32.mrb[0].mxu0
  %v481 = vadd.f32 0.0, %v480
  %v482 = vpop.f32.mrb[0].mxu0
  %v483 = vadd.f32 0.0, %v482
  %v484 = vpop.f32.mrb[0].mxu0
  %v485 = vadd.f32 0.0, %v484
  %v486 = vpop.f32.mrb[0].mxu0
  %v487 = vadd.f32 0.0, %v486
  %488 = vmatprep.mubr.bf16.mxu0 0
  %489 = vmatmul.mubr.bf16.gmra.mrb[0].mxu0 %v221
  %v490 = vpop.f32.mrb[0].mxu0
  %v491 = vadd.f32 0.0, %v490
  %v492 = vpop.f32.mrb[0].mxu0
  %v493 = vadd.f32 0.0, %v492
  %v494 = vpop.f32.mrb[0].mxu0
  %v495 = vadd.f32 0.0, %v494
  %v496 = vpop.f32.mrb[0].mxu0
  %v497 = vadd.f32 0.0, %v496
  %498 = vmatprep.mubr.bf16.mxu0 0
  %499 = vmatmul.mubr.bf16.gmra.mrb[0].mxu0 %v224
  %v500 = vpop.f32.mrb[0].mxu0
  %v501 = vadd.f32 0.0, %v500
  %v502 = vpop.f32.mrb[0].mxu0
  %v503 = vadd.f32 0.0, %v502
  %v504 = vpop.f32.mrb[0].mxu0
  %v505 = vadd.f32 0.0, %v504
  %v506 = vpop.f32.mrb[0].mxu0
  %v507 = vadd.f32 0.0, %v506
  %508 = vmatprep.mubr.bf16.mxu0 0
  %509 = vmatmul.mubr.bf16.gmra.mrb[0].mxu0 %v227
  %v510 = vpop.f32.mrb[0].mxu0
  %v511 = vadd.f32 0.0, %v510
  %v512 = vpop.f32.mrb[0].mxu0
  %v513 = vadd.f32 0.0, %v512
  %v514 = vpop.f32.mrb[0].mxu0
  %v515 = vadd.f32 0.0, %v514
  %v516 = vpop.f32.mrb[0].mxu0
  %v517 = vadd.f32 0.0, %v516
  %518 = vmatprep.mubr.bf16.mxu0 0
  %519 = vmatmul.mubr.bf16.gmra.mrb[0].mxu0 %v230
  %v520 = vpop.f32.mrb[0].mxu0
  %v521 = vadd.f32 0.0, %v520
  %v522 = vpop.f32.mrb[0].mxu0
  %v523 = vadd.f32 0.0, %v522
  %v524 = vpop.f32.mrb[0].mxu0
  %v525 = vadd.f32 0.0, %v524
  %v526 = vpop.f32.mrb[0].mxu0
  %v527 = vadd.f32 0.0, %v526
  %528 = vmatprep.mubr.bf16.mxu0 0
  %529 = vmatmul.mubr.bf16.gmra.mrb[0].mxu0 %v233
  %v530 = vpop.f32.mrb[0].mxu0
  %v531 = vadd.f32 0.0, %v530
  %v532 = vpop.f32.mrb[0].mxu0
  %v533 = vadd.f32 0.0, %v532
  %v534 = vpop.f32.mrb[0].mxu0
  %v535 = vadd.f32 0.0, %v534
  %v536 = vpop.f32.mrb[0].mxu0
  %v537 = vadd.f32 0.0, %v536
  %538 = vmatprep.mubr.bf16.mxu0 0
  %539 = vmatmul.mubr.bf16.gmra.mrb[0].mxu0 %v236
  %v540 = vpop.f32.mrb[0].mxu0
  %v541 = vadd.f32 0.0, %v540
  %v542 = vpop.f32.mrb[0].mxu0
  %v543 = vadd.f32 0.0, %v542
  %v544 = vpop.f32.mrb[0].mxu0
  %v545 = vadd.f32 0.0, %v544
  %v546 = vpop.f32.mrb[0].mxu0
  %v547 = vadd.f32 0.0, %v546
  %548 = vmatprep.mubr.bf16.mxu0 0
  %549 = vmatmul.mubr.bf16.gmra.mrb[0].mxu0 %v239
  %v550 = vpop.f32.mrb[0].mxu0
  %v551 = vadd.f32 0.0, %v550
  %v552 = vpop.f32.mrb[0].mxu0
  %v553 = vadd.f32 0.0, %v552
  %v554 = vpop.f32.mrb[0].mxu0
  %v555 = vadd.f32 0.0, %v554
  %v556 = vpop.f32.mrb[0].mxu0
  %v557 = vadd.f32 0.0, %v556
  %558 = vmatprep.mubr.bf16.mxu0 0
  %559 = vmatmul.mubr.bf16.gmra.mrb[0].mxu0 %v242
  %v560 = vpop.f32.mrb[0].mxu0
  %v561 = vadd.f32 0.0, %v560
  %v562 = vpop.f32.mrb[0].mxu0
  %v563 = vadd.f32 0.0, %v562
  %v564 = vpop.f32.mrb[0].mxu0
  %v565 = vadd.f32 0.0, %v564
  %v566 = vpop.f32.mrb[0].mxu0
  %v567 = vadd.f32 0.0, %v566
  %568 = vmatprep.mubr.bf16.mxu0 0
  %569 = vmatmul.mubr.bf16.gmra.mrb[0].mxu0 %v245
  %v570 = vpop.f32.mrb[0].mxu0
  %v571 = vadd.f32 0.0, %v570
  %v572 = vpop.f32.mrb[0].mxu0
  %v573 = vadd.f32 0.0, %v572
  %v574 = vpop.f32.mrb[0].mxu0
  %v575 = vadd.f32 0.0, %v574
  %v576 = vpop.f32.mrb[0].mxu0
  %v577 = vadd.f32 0.0, %v576
  %578 = vmatprep.mubr.bf16.mxu0 0
  %579 = vmatmul.mubr.bf16.gmra.mrb[0].mxu0 %v248
  %v580 = vpop.f32.mrb[0].mxu0
  %v581 = vadd.f32 0.0, %v580
  %v582 = vpop.f32.mrb[0].mxu0
  %v583 = vadd.f32 0.0, %v582
  %v584 = vpop.f32.mrb[0].mxu0
  %v585 = vadd.f32 0.0, %v584
  %v586 = vpop.f32.mrb[0].mxu0
  %v587 = vadd.f32 0.0, %v586
  %588 = vmatprep.mubr.bf16.mxu0 0
  %589 = vmatmul.mubr.bf16.gmra.mrb[0].mxu0 %v251
  %v590 = vpop.f32.mrb[0].mxu0
  %v591 = vadd.f32 0.0, %v590
  %v592 = vpop.f32.mrb[0].mxu0
  %v593 = vadd.f32 0.0, %v592
  %v594 = vpop.f32.mrb[0].mxu0
  %v595 = vadd.f32 0.0, %v594
  %v596 = vpop.f32.mrb[0].mxu0
  %v597 = vadd.f32 0.0, %v596
  %598 = vmatprep.mubr.bf16.mxu0 0
  %599 = vmatmul.mubr.bf16.gmra.mrb[0].mxu0 %v254
  %v600 = vpop.f32.mrb[0].mxu0
  %v601 = vadd.f32 0.0, %v600
  %v602 = vpop.f32.mrb[0].mxu0
  %v603 = vadd.f32 0.0, %v602
  %v604 = vpop.f32.mrb[0].mxu0
  %v605 = vadd.f32 0.0, %v604
  %v606 = vpop.f32.mrb[0].mxu0
  %v607 = vadd.f32 0.0, %v606
  %608 = vdwg.mxu0
  %v609 = vmax.f32 %v291, 0.0
  %v610 = vmax.f32 %v293, 0.0
  %v611 = vmax.f32 %v295, 0.0
  %v612 = vmax.f32 %v297, 0.0
  %v613 = vmax.f32 %v301, 0.0
  %v614 = vmax.f32 %v303, 0.0
  %v615 = vmax.f32 %v305, 0.0
  %v616 = vmax.f32 %v307, 0.0
  %v617 = vmax.f32 %v311, 0.0
  %v618 = vmax.f32 %v313, 0.0
  %v619 = vmax.f32 %v315, 0.0
  %v620 = vmax.f32 %v317, 0.0
  %v621 = vmax.f32 %v321, 0.0
  %v622 = vmax.f32 %v323, 0.0
  %v623 = vmax.f32 %v325, 0.0
  %v624 = vmax.f32 %v327, 0.0
  %v625 = vmax.f32 %v331, 0.0
  %v626 = vmax.f32 %v333, 0.0
  %v627 = vmax.f32 %v335, 0.0
  %v628 = vmax.f32 %v337, 0.0
  %v629 = vmax.f32 %v341, 0.0
  %v630 = vmax.f32 %v343, 0.0
  %v631 = vmax.f32 %v345, 0.0
  %v632 = vmax.f32 %v347, 0.0
  %v633 = vmax.f32 %v351, 0.0
  %v634 = vmax.f32 %v353, 0.0
  %v635 = vmax.f32 %v355, 0.0
  %v636 = vmax.f32 %v357, 0.0
  %v637 = vmax.f32 %v361, 0.0
  %v638 = vmax.f32 %v363, 0.0
  %v639 = vmax.f32 %v365, 0.0
  %v640 = vmax.f32 %v367, 0.0
  %v641 = vmax.f32 %v371, 0.0
  %v642 = vmax.f32 %v373, 0.0
  %v643 = vmax.f32 %v375, 0.0
  %v644 = vmax.f32 %v377, 0.0
  %v645 = vmax.f32 %v381, 0.0
  %v646 = vmax.f32 %v383, 0.0
  %v647 = vmax.f32 %v385, 0.0
  %v648 = vmax.f32 %v387, 0.0
  %v649 = vmax.f32 %v391, 0.0
  %v650 = vmax.f32 %v393, 0.0
  %v651 = vmax.f32 %v395, 0.0
  %v652 = vmax.f32 %v397, 0.0
  %v653 = vmax.f32 %v401, 0.0
  %v654 = vmax.f32 %v403, 0.0
  %v655 = vmax.f32 %v405, 0.0
  %v656 = vmax.f32 %v407, 0.0
  %v657 = vmax.f32 %v411, 0.0
  %v658 = vmax.f32 %v413, 0.0
  %v659 = vmax.f32 %v415, 0.0
  %v660 = vmax.f32 %v417, 0.0
  %v661 = vmax.f32 %v421, 0.0
  %v662 = vmax.f32 %v423, 0.0
  %v663 = vmax.f32 %v425, 0.0
  %v664 = vmax.f32 %v427, 0.0
  %v665 = vmax.f32 %v431, 0.0
  %v666 = vmax.f32 %v433, 0.0
  %v667 = vmax.f32 %v435, 0.0
  %v668 = vmax.f32 %v437, 0.0
  %v669 = vmax.f32 %v441, 0.0
  %v670 = vmax.f32 %v443, 0.0
  %v671 = vmax.f32 %v445, 0.0
  %v672 = vmax.f32 %v447, 0.0
  %v673 = vmax.f32 %v451, 0.0
  %v674 = vmax.f32 %v453, 0.0
  %v675 = vmax.f32 %v455, 0.0
  %v676 = vmax.f32 %v457, 0.0
  %v677 = vmax.f32 %v461, 0.0
  %v678 = vmax.f32 %v463, 0.0
  %v679 = vmax.f32 %v465, 0.0
  %v680 = vmax.f32 %v467, 0.0
  %v681 = vmax.f32 %v471, 0.0
  %v682 = vmax.f32 %v473, 0.0
  %v683 = vmax.f32 %v475, 0.0
  %v684 = vmax.f32 %v477, 0.0
  %v685 = vmax.f32 %v481, 0.0
  %v686 = vmax.f32 %v483, 0.0
  %v687 = vmax.f32 %v485, 0.0
  %v688 = vmax.f32 %v487, 0.0
  %v689 = vmax.f32 %v491, 0.0
  %v690 = vmax.f32 %v493, 0.0
  %v691 = vmax.f32 %v495, 0.0
  %v692 = vmax.f32 %v497, 0.0
  %v693 = vmax.f32 %v501, 0.0
  %v694 = vmax.f32 %v503, 0.0
  %v695 = vmax.f32 %v505, 0.0
  %v696 = vmax.f32 %v507, 0.0
  %v697 = vmax.f32 %v511, 0.0
  %v698 = vmax.f32 %v513, 0.0
  %v699 = vmax.f32 %v515, 0.0
  %v700 = vmax.f32 %v517, 0.0
  %v701 = vmax.f32 %v521, 0.0
  %v702 = vmax.f32 %v523, 0.0
  %v703 = vmax.f32 %v525, 0.0
  %v704 = vmax.f32 %v527, 0.0
  %v705 = vmax.f32 %v531, 0.0
  %v706 = vmax.f32 %v533, 0.0
  %v707 = vmax.f32 %v535, 0.0
  %v708 = vmax.f32 %v537, 0.0
  %v709 = vmax.f32 %v541, 0.0
  %v710 = vmax.f32 %v543, 0.0
  %v711 = vmax.f32 %v545, 0.0
  %v712 = vmax.f32 %v547, 0.0
  %v713 = vmax.f32 %v551, 0.0
  %v714 = vmax.f32 %v553, 0.0
  %v715 = vmax.f32 %v555, 0.0
  %v716 = vmax.f32 %v557, 0.0
  %v717 = vmax.f32 %v561, 0.0
  %v718 = vmax.f32 %v563, 0.0
  %v719 = vmax.f32 %v565, 0.0
  %v720 = vmax.f32 %v567, 0.0
  %v721 = vmax.f32 %v571, 0.0
  %v722 = vmax.f32 %v573, 0.0
  %v723 = vmax.f32 %v575, 0.0
  %v724 = vmax.f32 %v577, 0.0
  %v725 = vmax.f32 %v581, 0.0
  %v726 = vmax.f32 %v583, 0.0
  %v727 = vmax.f32 %v585, 0.0
  %v728 = vmax.f32 %v587, 0.0
  %v729 = vmax.f32 %v591, 0.0
  %v730 = vmax.f32 %v593, 0.0
  %v731 = vmax.f32 %v595, 0.0
  %v732 = vmax.f32 %v597, 0.0
  %v733 = vmax.f32 %v601, 0.0
  %v734 = vmax.f32 %v603, 0.0
  %v735 = vmax.f32 %v605, 0.0
  %v736 = vmax.f32 %v607, 0.0
  %v737 = vpack.c.bf16 %v611, %v609
  %v738 = vpack.c.bf16 %v612, %v610
  %v739 = vpack.c.bf16 %v615, %v613
  %v740 = vpack.c.bf16 %v616, %v614
  %v741 = vpack.c.bf16 %v619, %v617
  %v742 = vpack.c.bf16 %v620, %v618
  %v743 = vpack.c.bf16 %v623, %v621
  %v744 = vpack.c.bf16 %v624, %v622
  %v745 = vpack.c.bf16 %v627, %v625
  %v746 = vpack.c.bf16 %v628, %v626
  %v747 = vpack.c.bf16 %v631, %v629
  %v748 = vpack.c.bf16 %v632, %v630
  %v749 = vpack.c.bf16 %v635, %v633
  %v750 = vpack.c.bf16 %v636, %v634
  %v751 = vpack.c.bf16 %v639, %v637
  %v752 = vpack.c.bf16 %v640, %v638
  %v753 = vpack.c.bf16 %v643, %v641
  %v754 = vpack.c.bf16 %v644, %v642
  %v755 = vpack.c.bf16 %v647, %v645
  %v756 = vpack.c.bf16 %v648, %v646
  %v757 = vpack.c.bf16 %v651, %v649
  %v758 = vpack.c.bf16 %v652, %v650
  %v759 = vpack.c.bf16 %v655, %v653
  %v760 = vpack.c.bf16 %v656, %v654
  %v761 = vpack.c.bf16 %v659, %v657
  %v762 = vpack.c.bf16 %v660, %v658
  %v763 = vpack.c.bf16 %v663, %v661
  %v764 = vpack.c.bf16 %v664, %v662
  %v765 = vpack.c.bf16 %v667, %v665
  %v766 = vpack.c.bf16 %v668, %v666
  %v767 = vpack.c.bf16 %v671, %v669
  %v768 = vpack.c.bf16 %v672, %v670
  %v769 = vpack.c.bf16 %v675, %v673
  %v770 = vpack.c.bf16 %v676, %v674
  %v771 = vpack.c.bf16 %v679, %v677
  %v772 = vpack.c.bf16 %v680, %v678
  %v773 = vpack.c.bf16 %v683, %v681
  %v774 = vpack.c.bf16 %v684, %v682
  %v775 = vpack.c.bf16 %v687, %v685
  %v776 = vpack.c.bf16 %v688, %v686
  %v777 = vpack.c.bf16 %v691, %v689
  %v778 = vpack.c.bf16 %v692, %v690
  %v779 = vpack.c.bf16 %v695, %v693
  %v780 = vpack.c.bf16 %v696, %v694
  %v781 = vpack.c.bf16 %v699, %v697
  %v782 = vpack.c.bf16 %v700, %v698
  %v783 = vpack.c.bf16 %v703, %v701
  %v784 = vpack.c.bf16 %v704, %v702
  %v785 = vpack.c.bf16 %v707, %v705
  %v786 = vpack.c.bf16 %v708, %v706
  %v787 = vpack.c.bf16 %v711, %v709
  %v788 = vpack.c.bf16 %v712, %v710
  %v789 = vpack.c.bf16 %v715, %v713
  %v790 = vpack.c.bf16 %v716, %v714
  %v791 = vpack.c.bf16 %v719, %v717
  %v792 = vpack.c.bf16 %v720, %v718
  %v793 = vpack.c.bf16 %v723, %v721
  %v794 = vpack.c.bf16 %v724, %v722
  %v795 = vpack.c.bf16 %v727, %v725
  %v796 = vpack.c.bf16 %v728, %v726
  %v797 = vpack.c.bf16 %v731, %v729
  %v798 = vpack.c.bf16 %v732, %v730
  %v799 = vpack.c.bf16 %v735, %v733
  %v800 = vpack.c.bf16 %v736, %v734
  %v801 = vld [vmem:[%s2] sm:$0xf]
  %v802 = vld [vmem:[%s2 + $0x4] sm:$0xf]
  %v803 = vld [vmem:[%s2 + $0x8] sm:$0xf]
  %v804 = vld [vmem:[%s2 + $0xc] sm:$0xf]
  %v805 = vld [vmem:[%s2 + $0x10] sm:$0xf]
  %v806 = vld [vmem:[%s2 + $0x14] sm:$0xf]
  %v807 = vld [vmem:[%s2 + $0x18] sm:$0xf]
  %v808 = vld [vmem:[%s2 + $0x1c] sm:$0xf]
  %v809 = vld [vmem:[%s2 + $0x20] sm:$0xf]
  %v810 = vld [vmem:[%s2 + $0x24] sm:$0xf]
  %v811 = vld [vmem:[%s2 + $0x28] sm:$0xf]
  %v812 = vld [vmem:[%s2 + $0x2c] sm:$0xf]
  %v813 = vld [vmem:[%s2 + $0x30] sm:$0xf]
  %v814 = vld [vmem:[%s2 + $0x34] sm:$0xf]
  %v815 = vld [vmem:[%s2 + $0x38] sm:$0xf]
  %v816 = vld [vmem:[%s2 + $0x3c] sm:$0xf]
  %v817 = vld [vmem:[%s2 + $0x40] sm:$0xf]
  %v818 = vld [vmem:[%s2 + $0x44] sm:$0xf]
  %v819 = vld [vmem:[%s2 + $0x48] sm:$0xf]
  %v820 = vld [vmem:[%s2 + $0x4c] sm:$0xf]
  %v821 = vld [vmem:[%s2 + $0x50] sm:$0xf]
  %v822 = vld [vmem:[%s2 + $0x54] sm:$0xf]
  %v823 = vld [vmem:[%s2 + $0x58] sm:$0xf]
  %v824 = vld [vmem:[%s2 + $0x5c] sm:$0xf]
  %v825 = vld [vmem:[%s2 + $0x60] sm:$0xf]
  %v826 = vld [vmem:[%s2 + $0x64] sm:$0xf]
  %v827 = vld [vmem:[%s2 + $0x68] sm:$0xf]
  %v828 = vld [vmem:[%s2 + $0x6c] sm:$0xf]
  %v829 = vld [vmem:[%s2 + $0x70] sm:$0xf]
  %v830 = vld [vmem:[%s2 + $0x74] sm:$0xf]
  %v831 = vld [vmem:[%s2 + $0x78] sm:$0xf]
  %v832 = vld [vmem:[%s2 + $0x7c] sm:$0xf]
  %v865 = vunpack.c.l.b16 %v801
  %v866 = vunpack.c.l.b16 %v802
  %v867 = vunpack.c.l.b16 %v803
  %v868 = vunpack.c.l.b16 %v804
  %v869 = vunpack.c.l.b16 %v805
  %v870 = vunpack.c.l.b16 %v806
  %v871 = vunpack.c.l.b16 %v807
  %v872 = vunpack.c.l.b16 %v808
  %v873 = vunpack.c.l.b16 %v809
  %v874 = vunpack.c.l.b16 %v810
  %v875 = vunpack.c.l.b16 %v811
  %v876 = vunpack.c.l.b16 %v812
  %v877 = vunpack.c.l.b16 %v813
  %v878 = vunpack.c.l.b16 %v814
  %v879 = vunpack.c.l.b16 %v815
  %v880 = vunpack.c.l.b16 %v816
  %v881 = vunpack.c.l.b16 %v817
  %v882 = vunpack.c.l.b16 %v818
  %v883 = vunpack.c.l.b16 %v819
  %v884 = vunpack.c.l.b16 %v820
  %v885 = vunpack.c.l.b16 %v821
  %v886 = vunpack.c.l.b16 %v822
  %v887 = vunpack.c.l.b16 %v823
  %v888 = vunpack.c.l.b16 %v824
  %v889 = vunpack.c.l.b16 %v825
  %v890 = vunpack.c.l.b16 %v826
  %v891 = vunpack.c.l.b16 %v827
  %v892 = vunpack.c.l.b16 %v828
  %v893 = vunpack.c.l.b16 %v829
  %v894 = vunpack.c.l.b16 %v830
  %v895 = vunpack.c.l.b16 %v831
  %v896 = vunpack.c.l.b16 %v832
  %v897 = vpack.c.b16 %v866, %v865
  %v898 = vpack.c.b16 %v868, %v867
  %v899 = vpack.c.b16 %v870, %v869
  %v900 = vpack.c.b16 %v872, %v871
  %v901 = vpack.c.b16 %v874, %v873
  %v902 = vpack.c.b16 %v876, %v875
  %v903 = vpack.c.b16 %v878, %v877
  %v904 = vpack.c.b16 %v880, %v879
  %v905 = vpack.c.b16 %v882, %v881
  %v906 = vpack.c.b16 %v884, %v883
  %v907 = vpack.c.b16 %v886, %v885
  %v908 = vpack.c.b16 %v888, %v887
  %v909 = vpack.c.b16 %v890, %v889
  %v910 = vpack.c.b16 %v892, %v891
  %v911 = vpack.c.b16 %v894, %v893
  %v912 = vpack.c.b16 %v896, %v895
  %929 = vmatprep.subr.bf16.mxu0 0
  %930 = vmatpush1.bf16.msra.mxu0 %v897
  %931 = vmatprep.subr.bf16.mxu0 0
  %932 = vmatpush1.bf16.msra.mxu0 %v898
  %933 = vmatprep.subr.bf16.mxu0 0
  %934 = vmatpush1.bf16.msra.mxu0 %v899
  %935 = vmatprep.subr.bf16.mxu0 0
  %936 = vmatpush1.bf16.msra.mxu0 %v900
  %937 = vmatprep.subr.bf16.mxu0 0
  %938 = vmatpush1.bf16.msra.mxu0 %v901
  %939 = vmatprep.subr.bf16.mxu0 0
  %940 = vmatpush1.bf16.msra.mxu0 %v902
  %941 = vmatprep.subr.bf16.mxu0 0
  %942 = vmatpush1.bf16.msra.mxu0 %v903
  %943 = vmatprep.subr.bf16.mxu0 0
  %944 = vmatpush1.bf16.msra.mxu0 %v904
  %945 = vmatprep.subr.bf16.mxu0 0
  %946 = vmatpush1.bf16.msra.mxu0 %v905
  %947 = vmatprep.subr.bf16.mxu0 0
  %948 = vmatpush1.bf16.msra.mxu0 %v906
  %949 = vmatprep.subr.bf16.mxu0 0
  %950 = vmatpush1.bf16.msra.mxu0 %v907
  %951 = vmatprep.subr.bf16.mxu0 0
  %952 = vmatpush1.bf16.msra.mxu0 %v908
  %953 = vmatprep.subr.bf16.mxu0 0
  %954 = vmatpush1.bf16.msra.mxu0 %v909
  %955 = vmatprep.subr.bf16.mxu0 0
  %956 = vmatpush1.bf16.msra.mxu0 %v910
  %957 = vmatprep.subr.bf16.mxu0 0
  %958 = vmatpush1.bf16.msra.mxu0 %v911
  %959 = vmatprep.subr.bf16.mxu0 0
  %960 = vmatpush1.bf16.msra.mxu0 %v912
  %961 = vmatprep.mubr.bf16.mxu0 %v738
  %962 = vmatmul.mubr.bf16.gmra.mrb[0].mxu0 %v737
  %v963 = vpop.f32.mrb[0].mxu0
  %v964 = vadd.f32 %v15, %v963
  %v965 = vpop.f32.mrb[0].mxu0
  %v966 = vpop.f32.mrb[0].mxu0
  %v967 = vadd.f32 %v16, %v966
  %v968 = vpop.f32.mrb[0].mxu0
  %969 = vmatprep.mubr.bf16.mxu0 %v740
  %970 = vmatmul.mubr.bf16.gmra.mrb[0].mxu0 %v739
  %v971 = vpop.f32.mrb[0].mxu0
  %v972 = vadd.f32 %v17, %v971
  %v973 = vpop.f32.mrb[0].mxu0
  %v974 = vpop.f32.mrb[0].mxu0
  %v975 = vadd.f32 %v18, %v974
  %v976 = vpop.f32.mrb[0].mxu0
  %977 = vmatprep.mubr.bf16.mxu0 %v742
  %978 = vmatmul.mubr.bf16.gmra.mrb[0].mxu0 %v741
  %v979 = vpop.f32.mrb[0].mxu0
  %v980 = vadd.f32 %v19, %v979
  %v981 = vpop.f32.mrb[0].mxu0
  %v982 = vpop.f32.mrb[0].mxu0
  %v983 = vadd.f32 %v20, %v982
  %v984 = vpop.f32.mrb[0].mxu0
  %985 = vmatprep.mubr.bf16.mxu0 %v744
  %986 = vmatmul.mubr.bf16.gmra.mrb[0].mxu0 %v743
  %v987 = vpop.f32.mrb[0].mxu0
  %v988 = vadd.f32 %v21, %v987
  %v989 = vpop.f32.mrb[0].mxu0
  %v990 = vpop.f32.mrb[0].mxu0
  %v991 = vadd.f32 %v22, %v990
  %v992 = vpop.f32.mrb[0].mxu0
  %993 = vmatprep.mubr.bf16.mxu0 %v746
  %994 = vmatmul.mubr.bf16.gmra.mrb[0].mxu0 %v745
  %v995 = vpop.f32.mrb[0].mxu0
  %v996 = vadd.f32 %v23, %v995
  %v997 = vpop.f32.mrb[0].mxu0
  %v998 = vpop.f32.mrb[0].mxu0
  %v999 = vadd.f32 %v24, %v998
  %v1000 = vpop.f32.mrb[0].mxu0
  %1001 = vmatprep.mubr.bf16.mxu0 %v748
  %1002 = vmatmul.mubr.bf16.gmra.mrb[0].mxu0 %v747
  %v1003 = vpop.f32.mrb[0].mxu0
  %v1004 = vadd.f32 %v25, %v1003
  %v1005 = vpop.f32.mrb[0].mxu0
  %v1006 = vpop.f32.mrb[0].mxu0
  %v1007 = vadd.f32 %v26, %v1006
  %v1008 = vpop.f32.mrb[0].mxu0
  %1009 = vmatprep.mubr.bf16.mxu0 %v750
  %1010 = vmatmul.mubr.bf16.gmra.mrb[0].mxu0 %v749
  %v1011 = vpop.f32.mrb[0].mxu0
  %v1012 = vadd.f32 %v27, %v1011
  %v1013 = vpop.f32.mrb[0].mxu0
  %v1014 = vpop.f32.mrb[0].mxu0
  %v1015 = vadd.f32 %v28, %v1014
  %v1016 = vpop.f32.mrb[0].mxu0
  %1017 = vmatprep.mubr.bf16.mxu0 %v752
  %1018 = vmatmul.mubr.bf16.gmra.mrb[0].mxu0 %v751
  %v1019 = vpop.f32.mrb[0].mxu0
  %v1020 = vadd.f32 %v29, %v1019
  %v1021 = vpop.f32.mrb[0].mxu0
  %v1022 = vpop.f32.mrb[0].mxu0
  %v1023 = vadd.f32 %v30, %v1022
  %v1024 = vpop.f32.mrb[0].mxu0
  %1025 = vmatprep.mubr.bf16.mxu0 %v754
  %1026 = vmatmul.mubr.bf16.gmra.mrb[0].mxu0 %v753
  %v1027 = vpop.f32.mrb[0].mxu0
  %v1028 = vadd.f32 %v31, %v1027
  %v1029 = vpop.f32.mrb[0].mxu0
  %v1030 = vpop.f32.mrb[0].mxu0
  %v1031 = vadd.f32 %v32, %v1030
  %v1032 = vpop.f32.mrb[0].mxu0
  %1033 = vmatprep.mubr.bf16.mxu0 %v756
  %1034 = vmatmul.mubr.bf16.gmra.mrb[0].mxu0 %v755
  %v1035 = vpop.f32.mrb[0].mxu0
  %v1036 = vadd.f32 %v33, %v1035
  %v1037 = vpop.f32.mrb[0].mxu0
  %v1038 = vpop.f32.mrb[0].mxu0
  %v1039 = vadd.f32 %v34, %v1038
  %v1040 = vpop.f32.mrb[0].mxu0
  %1041 = vmatprep.mubr.bf16.mxu0 %v758
  %1042 = vmatmul.mubr.bf16.gmra.mrb[0].mxu0 %v757
  %v1043 = vpop.f32.mrb[0].mxu0
  %v1044 = vadd.f32 %v35, %v1043
  %v1045 = vpop.f32.mrb[0].mxu0
  %v1046 = vpop.f32.mrb[0].mxu0
  %v1047 = vadd.f32 %v36, %v1046
  %v1048 = vpop.f32.mrb[0].mxu0
  %1049 = vmatprep.mubr.bf16.mxu0 %v760
  %1050 = vmatmul.mubr.bf16.gmra.mrb[0].mxu0 %v759
  %v1051 = vpop.f32.mrb[0].mxu0
  %v1052 = vadd.f32 %v37, %v1051
  %v1053 = vpop.f32.mrb[0].mxu0
  %v1054 = vpop.f32.mrb[0].mxu0
  %v1055 = vadd.f32 %v38, %v1054
  %v1056 = vpop.f32.mrb[0].mxu0
  %1057 = vmatprep.mubr.bf16.mxu0 %v762
  %1058 = vmatmul.mubr.bf16.gmra.mrb[0].mxu0 %v761
  %v1059 = vpop.f32.mrb[0].mxu0
  %v1060 = vadd.f32 %v39, %v1059
  %v1061 = vpop.f32.mrb[0].mxu0
  %v1062 = vpop.f32.mrb[0].mxu0
  %v1063 = vadd.f32 %v40, %v1062
  %v1064 = vpop.f32.mrb[0].mxu0
  %1065 = vmatprep.mubr.bf16.mxu0 %v764
  %1066 = vmatmul.mubr.bf16.gmra.mrb[0].mxu0 %v763
  %v1067 = vpop.f32.mrb[0].mxu0
  %v1068 = vadd.f32 %v41, %v1067
  %v1069 = vpop.f32.mrb[0].mxu0
  %v1070 = vpop.f32.mrb[0].mxu0
  %v1071 = vadd.f32 %v42, %v1070
  %v1072 = vpop.f32.mrb[0].mxu0
  %1073 = vmatprep.mubr.bf16.mxu0 %v766
  %1074 = vmatmul.mubr.bf16.gmra.mrb[0].mxu0 %v765
  %v1075 = vpop.f32.mrb[0].mxu0
  %v1076 = vadd.f32 %v43, %v1075
  %v1077 = vpop.f32.mrb[0].mxu0
  %v1078 = vpop.f32.mrb[0].mxu0
  %v1079 = vadd.f32 %v44, %v1078
  %v1080 = vpop.f32.mrb[0].mxu0
  %1081 = vmatprep.mubr.bf16.mxu0 %v768
  %1082 = vmatmul.mubr.bf16.gmra.mrb[0].mxu0 %v767
  %v1083 = vpop.f32.mrb[0].mxu0
  %v1084 = vadd.f32 %v45, %v1083
  %v1085 = vpop.f32.mrb[0].mxu0
  %v1086 = vpop.f32.mrb[0].mxu0
  %v1087 = vadd.f32 %v46, %v1086
  %v1088 = vpop.f32.mrb[0].mxu0
  %1089 = vmatprep.mubr.bf16.mxu0 %v770
  %1090 = vmatmul.mubr.bf16.gmra.mrb[0].mxu0 %v769
  %v1091 = vpop.f32.mrb[0].mxu0
  %v1092 = vadd.f32 %v47, %v1091
  %v1093 = vpop.f32.mrb[0].mxu0
  %v1094 = vpop.f32.mrb[0].mxu0
  %v1095 = vadd.f32 %v48, %v1094
  %v1096 = vpop.f32.mrb[0].mxu0
  %1097 = vmatprep.mubr.bf16.mxu0 %v772
  %1098 = vmatmul.mubr.bf16.gmra.mrb[0].mxu0 %v771
  %v1099 = vpop.f32.mrb[0].mxu0
  %v1100 = vadd.f32 %v49, %v1099
  %v1101 = vpop.f32.mrb[0].mxu0
  %v1102 = vpop.f32.mrb[0].mxu0
  %v1103 = vadd.f32 %v50, %v1102
  %v1104 = vpop.f32.mrb[0].mxu0
  %1105 = vmatprep.mubr.bf16.mxu0 %v774
  %1106 = vmatmul.mubr.bf16.gmra.mrb[0].mxu0 %v773
  %v1107 = vpop.f32.mrb[0].mxu0
  %v1108 = vadd.f32 %v51, %v1107
  %v1109 = vpop.f32.mrb[0].mxu0
  %v1110 = vpop.f32.mrb[0].mxu0
  %v1111 = vadd.f32 %v52, %v1110
  %v1112 = vpop.f32.mrb[0].mxu0
  %1113 = vmatprep.mubr.bf16.mxu0 %v776
  %1114 = vmatmul.mubr.bf16.gmra.mrb[0].mxu0 %v775
  %v1115 = vpop.f32.mrb[0].mxu0
  %v1116 = vadd.f32 %v53, %v1115
  %v1117 = vpop.f32.mrb[0].mxu0
  %v1118 = vpop.f32.mrb[0].mxu0
  %v1119 = vadd.f32 %v54, %v1118
  %v1120 = vpop.f32.mrb[0].mxu0
  %1121 = vmatprep.mubr.bf16.mxu0 %v778
  %1122 = vmatmul.mubr.bf16.gmra.mrb[0].mxu0 %v777
  %v1123 = vpop.f32.mrb[0].mxu0
  %v1124 = vadd.f32 %v55, %v1123
  %v1125 = vpop.f32.mrb[0].mxu0
  %v1126 = vpop.f32.mrb[0].mxu0
  %v1127 = vadd.f32 %v56, %v1126
  %v1128 = vpop.f32.mrb[0].mxu0
  %1129 = vmatprep.mubr.bf16.mxu0 %v780
  %1130 = vmatmul.mubr.bf16.gmra.mrb[0].mxu0 %v779
  %v1131 = vpop.f32.mrb[0].mxu0
  %v1132 = vadd.f32 %v57, %v1131
  %v1133 = vpop.f32.mrb[0].mxu0
  %v1134 = vpop.f32.mrb[0].mxu0
  %v1135 = vadd.f32 %v58, %v1134
  %v1136 = vpop.f32.mrb[0].mxu0
  %1137 = vmatprep.mubr.bf16.mxu0 %v782
  %1138 = vmatmul.mubr.bf16.gmra.mrb[0].mxu0 %v781
  %v1139 = vpop.f32.mrb[0].mxu0
  %v1140 = vadd.f32 %v59, %v1139
  %v1141 = vpop.f32.mrb[0].mxu0
  %v1142 = vpop.f32.mrb[0].mxu0
  %v1143 = vadd.f32 %v60, %v1142
  %v1144 = vpop.f32.mrb[0].mxu0
  %1145 = vmatprep.mubr.bf16.mxu0 %v784
  %1146 = vmatmul.mubr.bf16.gmra.mrb[0].mxu0 %v783
  %v1147 = vpop.f32.mrb[0].mxu0
  %v1148 = vadd.f32 %v61, %v1147
  %v1149 = vpop.f32.mrb[0].mxu0
  %v1150 = vpop.f32.mrb[0].mxu0
  %v1151 = vadd.f32 %v62, %v1150
  %v1152 = vpop.f32.mrb[0].mxu0
  %1153 = vmatprep.mubr.bf16.mxu0 %v786
  %1154 = vmatmul.mubr.bf16.gmra.mrb[0].mxu0 %v785
  %v1155 = vpop.f32.mrb[0].mxu0
  %v1156 = vadd.f32 %v63, %v1155
  %v1157 = vpop.f32.mrb[0].mxu0
  %v1158 = vpop.f32.mrb[0].mxu0
  %v1159 = vadd.f32 %v64, %v1158
  %v1160 = vpop.f32.mrb[0].mxu0
  %1161 = vmatprep.mubr.bf16.mxu0 %v788
  %1162 = vmatmul.mubr.bf16.gmra.mrb[0].mxu0 %v787
  %v1163 = vpop.f32.mrb[0].mxu0
  %v1164 = vadd.f32 %v65, %v1163
  %v1165 = vpop.f32.mrb[0].mxu0
  %v1166 = vpop.f32.mrb[0].mxu0
  %v1167 = vadd.f32 %v66, %v1166
  %v1168 = vpop.f32.mrb[0].mxu0
  %1169 = vmatprep.mubr.bf16.mxu0 %v790
  %1170 = vmatmul.mubr.bf16.gmra.mrb[0].mxu0 %v789
  %v1171 = vpop.f32.mrb[0].mxu0
  %v1172 = vadd.f32 %v67, %v1171
  %v1173 = vpop.f32.mrb[0].mxu0
  %v1174 = vpop.f32.mrb[0].mxu0
  %v1175 = vadd.f32 %v68, %v1174
  %v1176 = vpop.f32.mrb[0].mxu0
  %1177 = vmatprep.mubr.bf16.mxu0 %v792
  %1178 = vmatmul.mubr.bf16.gmra.mrb[0].mxu0 %v791
  %v1179 = vpop.f32.mrb[0].mxu0
  %v1180 = vadd.f32 %v69, %v1179
  %v1181 = vpop.f32.mrb[0].mxu0
  %v1182 = vpop.f32.mrb[0].mxu0
  %v1183 = vadd.f32 %v70, %v1182
  %v1184 = vpop.f32.mrb[0].mxu0
  %1185 = vmatprep.mubr.bf16.mxu0 %v794
  %1186 = vmatmul.mubr.bf16.gmra.mrb[0].mxu0 %v793
  %v1187 = vpop.f32.mrb[0].mxu0
  %v1188 = vadd.f32 %v71, %v1187
  %v1189 = vpop.f32.mrb[0].mxu0
  %v1190 = vpop.f32.mrb[0].mxu0
  %v1191 = vadd.f32 %v72, %v1190
  %v1192 = vpop.f32.mrb[0].mxu0
  %1193 = vmatprep.mubr.bf16.mxu0 %v796
  %1194 = vmatmul.mubr.bf16.gmra.mrb[0].mxu0 %v795
  %v1195 = vpop.f32.mrb[0].mxu0
  %v1196 = vadd.f32 %v73, %v1195
  %v1197 = vpop.f32.mrb[0].mxu0
  %v1198 = vpop.f32.mrb[0].mxu0
  %v1199 = vadd.f32 %v74, %v1198
  %v1200 = vpop.f32.mrb[0].mxu0
  %1201 = vmatprep.mubr.bf16.mxu0 %v798
  %1202 = vmatmul.mubr.bf16.gmra.mrb[0].mxu0 %v797
  %v1203 = vpop.f32.mrb[0].mxu0
  %v1204 = vadd.f32 %v75, %v1203
  %v1205 = vpop.f32.mrb[0].mxu0
  %v1206 = vpop.f32.mrb[0].mxu0
  %v1207 = vadd.f32 %v76, %v1206
  %v1208 = vpop.f32.mrb[0].mxu0
  %1209 = vmatprep.mubr.bf16.mxu0 %v800
  %1210 = vmatmul.mubr.bf16.gmra.mrb[0].mxu0 %v799
  %v1211 = vpop.f32.mrb[0].mxu0
  %v1212 = vadd.f32 %v77, %v1211
  %v1213 = vpop.f32.mrb[0].mxu0
  %v1214 = vpop.f32.mrb[0].mxu0
  %v1215 = vadd.f32 %v78, %v1214
  %v1216 = vpop.f32.mrb[0].mxu0
  %1217 = vdwg.mxu0
  %v1218 = vsel %vm159, %v964, 0.0
  %1219 = vadd.xlane.f32.xlu0 %v1218
  %v1220 = vpop.xlane.xlu0 %1219
  %v1221 = vsel %vm159, %v967, 0.0
  %1222 = vadd.xlane.f32.xlu0 %v1221
  %v1223 = vpop.xlane.xlu0 %1222
  %v1224 = vsel %vm159, %v972, 0.0
  %1225 = vadd.xlane.f32.xlu0 %v1224
  %v1226 = vpop.xlane.xlu0 %1225
  %v1227 = vsel %vm159, %v975, 0.0
  %1228 = vadd.xlane.f32.xlu0 %v1227
  %v1229 = vpop.xlane.xlu0 %1228
  %v1230 = vsel %vm159, %v980, 0.0
  %1231 = vadd.xlane.f32.xlu0 %v1230
  %v1232 = vpop.xlane.xlu0 %1231
  %v1233 = vsel %vm159, %v983, 0.0
  %1234 = vadd.xlane.f32.xlu0 %v1233
  %v1235 = vpop.xlane.xlu0 %1234
  %v1236 = vsel %vm159, %v988, 0.0
  %1237 = vadd.xlane.f32.xlu0 %v1236
  %v1238 = vpop.xlane.xlu0 %1237
  %v1239 = vsel %vm159, %v991, 0.0
  %1240 = vadd.xlane.f32.xlu0 %v1239
  %v1241 = vpop.xlane.xlu0 %1240
  %v1242 = vsel %vm159, %v996, 0.0
  %1243 = vadd.xlane.f32.xlu0 %v1242
  %v1244 = vpop.xlane.xlu0 %1243
  %v1245 = vsel %vm159, %v999, 0.0
  %1246 = vadd.xlane.f32.xlu0 %v1245
  %v1247 = vpop.xlane.xlu0 %1246
  %v1248 = vsel %vm159, %v1004, 0.0
  %1249 = vadd.xlane.f32.xlu0 %v1248
  %v1250 = vpop.xlane.xlu0 %1249
  %v1251 = vsel %vm159, %v1007, 0.0
  %1252 = vadd.xlane.f32.xlu0 %v1251
  %v1253 = vpop.xlane.xlu0 %1252
  %v1254 = vsel %vm159, %v1012, 0.0
  %1255 = vadd.xlane.f32.xlu0 %v1254
  %v1256 = vpop.xlane.xlu0 %1255
  %v1257 = vsel %vm159, %v1015, 0.0
  %1258 = vadd.xlane.f32.xlu0 %v1257
  %v1259 = vpop.xlane.xlu0 %1258
  %v1260 = vsel %vm159, %v1020, 0.0
  %1261 = vadd.xlane.f32.xlu0 %v1260
  %v1262 = vpop.xlane.xlu0 %1261
  %v1263 = vsel %vm159, %v1023, 0.0
  %1264 = vadd.xlane.f32.xlu0 %v1263
  %v1265 = vpop.xlane.xlu0 %1264
  %v1266 = vsel %vm159, %v1028, 0.0
  %1267 = vadd.xlane.f32.xlu0 %v1266
  %v1268 = vpop.xlane.xlu0 %1267
  %v1269 = vsel %vm159, %v1031, 0.0
  %1270 = vadd.xlane.f32.xlu0 %v1269
  %v1271 = vpop.xlane.xlu0 %1270
  %v1272 = vsel %vm159, %v1036, 0.0
  %1273 = vadd.xlane.f32.xlu0 %v1272
  %v1274 = vpop.xlane.xlu0 %1273
  %v1275 = vsel %vm159, %v1039, 0.0
  %1276 = vadd.xlane.f32.xlu0 %v1275
  %v1277 = vpop.xlane.xlu0 %1276
  %v1278 = vsel %vm159, %v1044, 0.0
  %1279 = vadd.xlane.f32.xlu0 %v1278
  %v1280 = vpop.xlane.xlu0 %1279
  %v1281 = vsel %vm159, %v1047, 0.0
  %1282 = vadd.xlane.f32.xlu0 %v1281
  %v1283 = vpop.xlane.xlu0 %1282
  %v1284 = vsel %vm159, %v1052, 0.0
  %1285 = vadd.xlane.f32.xlu0 %v1284
  %v1286 = vpop.xlane.xlu0 %1285
  %v1287 = vsel %vm159, %v1055, 0.0
  %1288 = vadd.xlane.f32.xlu0 %v1287
  %v1289 = vpop.xlane.xlu0 %1288
  %v1290 = vsel %vm159, %v1060, 0.0
  %1291 = vadd.xlane.f32.xlu0 %v1290
  %v1292 = vpop.xlane.xlu0 %1291
  %v1293 = vsel %vm159, %v1063, 0.0
  %1294 = vadd.xlane.f32.xlu0 %v1293
  %v1295 = vpop.xlane.xlu0 %1294
  %v1296 = vsel %vm159, %v1068, 0.0
  %1297 = vadd.xlane.f32.xlu0 %v1296
  %v1298 = vpop.xlane.xlu0 %1297
  %v1299 = vsel %vm159, %v1071, 0.0
  %1300 = vadd.xlane.f32.xlu0 %v1299
  %v1301 = vpop.xlane.xlu0 %1300
  %v1302 = vsel %vm159, %v1076, 0.0
  %1303 = vadd.xlane.f32.xlu0 %v1302
  %v1304 = vpop.xlane.xlu0 %1303
  %v1305 = vsel %vm159, %v1079, 0.0
  %1306 = vadd.xlane.f32.xlu0 %v1305
  %v1307 = vpop.xlane.xlu0 %1306
  %v1308 = vsel %vm159, %v1084, 0.0
  %1309 = vadd.xlane.f32.xlu0 %v1308
  %v1310 = vpop.xlane.xlu0 %1309
  %v1311 = vsel %vm159, %v1087, 0.0
  %1312 = vadd.xlane.f32.xlu0 %v1311
  %v1313 = vpop.xlane.xlu0 %1312
  %v1314 = vsel %vm159, %v1092, 0.0
  %1315 = vadd.xlane.f32.xlu0 %v1314
  %v1316 = vpop.xlane.xlu0 %1315
  %v1317 = vsel %vm159, %v1095, 0.0
  %1318 = vadd.xlane.f32.xlu0 %v1317
  %v1319 = vpop.xlane.xlu0 %1318
  %v1320 = vsel %vm159, %v1100, 0.0
  %1321 = vadd.xlane.f32.xlu0 %v1320
  %v1322 = vpop.xlane.xlu0 %1321
  %v1323 = vsel %vm159, %v1103, 0.0
  %1324 = vadd.xlane.f32.xlu0 %v1323
  %v1325 = vpop.xlane.xlu0 %1324
  %v1326 = vsel %vm159, %v1108, 0.0
  %1327 = vadd.xlane.f32.xlu0 %v1326
  %v1328 = vpop.xlane.xlu0 %1327
  %v1329 = vsel %vm159, %v1111, 0.0
  %1330 = vadd.xlane.f32.xlu0 %v1329
  %v1331 = vpop.xlane.xlu0 %1330
  %v1332 = vsel %vm159, %v1116, 0.0
  %1333 = vadd.xlane.f32.xlu0 %v1332
  %v1334 = vpop.xlane.xlu0 %1333
  %v1335 = vsel %vm159, %v1119, 0.0
  %1336 = vadd.xlane.f32.xlu0 %v1335
  %v1337 = vpop.xlane.xlu0 %1336
  %v1338 = vsel %vm159, %v1124, 0.0
  %1339 = vadd.xlane.f32.xlu0 %v1338
  %v1340 = vpop.xlane.xlu0 %1339
  %v1341 = vsel %vm159, %v1127, 0.0
  %1342 = vadd.xlane.f32.xlu0 %v1341
  %v1343 = vpop.xlane.xlu0 %1342
  %v1344 = vsel %vm159, %v1132, 0.0
  %1345 = vadd.xlane.f32.xlu0 %v1344
  %v1346 = vpop.xlane.xlu0 %1345
  %v1347 = vsel %vm159, %v1135, 0.0
  %1348 = vadd.xlane.f32.xlu0 %v1347
  %v1349 = vpop.xlane.xlu0 %1348
  %v1350 = vsel %vm159, %v1140, 0.0
  %1351 = vadd.xlane.f32.xlu0 %v1350
  %v1352 = vpop.xlane.xlu0 %1351
  %v1353 = vsel %vm159, %v1143, 0.0
  %1354 = vadd.xlane.f32.xlu0 %v1353
  %v1355 = vpop.xlane.xlu0 %1354
  %v1356 = vsel %vm159, %v1148, 0.0
  %1357 = vadd.xlane.f32.xlu0 %v1356
  %v1358 = vpop.xlane.xlu0 %1357
  %v1359 = vsel %vm159, %v1151, 0.0
  %1360 = vadd.xlane.f32.xlu0 %v1359
  %v1361 = vpop.xlane.xlu0 %1360
  %v1362 = vsel %vm159, %v1156, 0.0
  %1363 = vadd.xlane.f32.xlu0 %v1362
  %v1364 = vpop.xlane.xlu0 %1363
  %v1365 = vsel %vm159, %v1159, 0.0
  %1366 = vadd.xlane.f32.xlu0 %v1365
  %v1367 = vpop.xlane.xlu0 %1366
  %v1368 = vsel %vm159, %v1164, 0.0
  %1369 = vadd.xlane.f32.xlu0 %v1368
  %v1370 = vpop.xlane.xlu0 %1369
  %v1371 = vsel %vm159, %v1167, 0.0
  %1372 = vadd.xlane.f32.xlu0 %v1371
  %v1373 = vpop.xlane.xlu0 %1372
  %v1374 = vsel %vm159, %v1172, 0.0
  %1375 = vadd.xlane.f32.xlu0 %v1374
  %v1376 = vpop.xlane.xlu0 %1375
  %v1377 = vsel %vm159, %v1175, 0.0
  %1378 = vadd.xlane.f32.xlu0 %v1377
  %v1379 = vpop.xlane.xlu0 %1378
  %v1380 = vsel %vm159, %v1180, 0.0
  %1381 = vadd.xlane.f32.xlu0 %v1380
  %v1382 = vpop.xlane.xlu0 %1381
  %v1383 = vsel %vm159, %v1183, 0.0
  %1384 = vadd.xlane.f32.xlu0 %v1383
  %v1385 = vpop.xlane.xlu0 %1384
  %v1386 = vsel %vm159, %v1188, 0.0
  %1387 = vadd.xlane.f32.xlu0 %v1386
  %v1388 = vpop.xlane.xlu0 %1387
  %v1389 = vsel %vm159, %v1191, 0.0
  %1390 = vadd.xlane.f32.xlu0 %v1389
  %v1391 = vpop.xlane.xlu0 %1390
  %v1392 = vsel %vm159, %v1196, 0.0
  %1393 = vadd.xlane.f32.xlu0 %v1392
  %v1394 = vpop.xlane.xlu0 %1393
  %v1395 = vsel %vm159, %v1199, 0.0
  %1396 = vadd.xlane.f32.xlu0 %v1395
  %v1397 = vpop.xlane.xlu0 %1396
  %v1398 = vsel %vm159, %v1204, 0.0
  %1399 = vadd.xlane.f32.xlu0 %v1398
  %v1400 = vpop.xlane.xlu0 %1399
  %v1401 = vsel %vm159, %v1207, 0.0
  %1402 = vadd.xlane.f32.xlu0 %v1401
  %v1403 = vpop.xlane.xlu0 %1402
  %v1404 = vsel %vm159, %v1212, 0.0
  %1405 = vadd.xlane.f32.xlu0 %v1404
  %v1406 = vpop.xlane.xlu0 %1405
  %v1407 = vsel %vm159, %v1215, 0.0
  %1408 = vadd.xlane.f32.xlu0 %v1407
  %v1409 = vpop.xlane.xlu0 %1408
  %v1410 = vrcp.pop 64.0
  %v1411 = vmul.f32 %v1220, %v1410
  %v1412 = vmul.f32 %v1223, %v1410
  %v1413 = vmul.f32 %v1226, %v1410
  %v1414 = vmul.f32 %v1229, %v1410
  %v1415 = vmul.f32 %v1232, %v1410
  %v1416 = vmul.f32 %v1235, %v1410
  %v1417 = vmul.f32 %v1238, %v1410
  %v1418 = vmul.f32 %v1241, %v1410
  %v1419 = vmul.f32 %v1244, %v1410
  %v1420 = vmul.f32 %v1247, %v1410
  %v1421 = vmul.f32 %v1250, %v1410
  %v1422 = vmul.f32 %v1253, %v1410
  %v1423 = vmul.f32 %v1256, %v1410
  %v1424 = vmul.f32 %v1259, %v1410
  %v1425 = vmul.f32 %v1262, %v1410
  %v1426 = vmul.f32 %v1265, %v1410
  %v1427 = vmul.f32 %v1268, %v1410
  %v1428 = vmul.f32 %v1271, %v1410
  %v1429 = vmul.f32 %v1274, %v1410
  %v1430 = vmul.f32 %v1277, %v1410
  %v1431 = vmul.f32 %v1280, %v1410
  %v1432 = vmul.f32 %v1283, %v1410
  %v1433 = vmul.f32 %v1286, %v1410
  %v1434 = vmul.f32 %v1289, %v1410
  %v1435 = vmul.f32 %v1292, %v1410
  %v1436 = vmul.f32 %v1295, %v1410
  %v1437 = vmul.f32 %v1298, %v1410
  %v1438 = vmul.f32 %v1301, %v1410
  %v1439 = vmul.f32 %v1304, %v1410
  %v1440 = vmul.f32 %v1307, %v1410
  %v1441 = vmul.f32 %v1310, %v1410
  %v1442 = vmul.f32 %v1313, %v1410
  %v1443 = vmul.f32 %v1316, %v1410
  %v1444 = vmul.f32 %v1319, %v1410
  %v1445 = vmul.f32 %v1322, %v1410
  %v1446 = vmul.f32 %v1325, %v1410
  %v1447 = vmul.f32 %v1328, %v1410
  %v1448 = vmul.f32 %v1331, %v1410
  %v1449 = vmul.f32 %v1334, %v1410
  %v1450 = vmul.f32 %v1337, %v1410
  %v1451 = vmul.f32 %v1340, %v1410
  %v1452 = vmul.f32 %v1343, %v1410
  %v1453 = vmul.f32 %v1346, %v1410
  %v1454 = vmul.f32 %v1349, %v1410
  %v1455 = vmul.f32 %v1352, %v1410
  %v1456 = vmul.f32 %v1355, %v1410
  %v1457 = vmul.f32 %v1358, %v1410
  %v1458 = vmul.f32 %v1361, %v1410
  %v1459 = vmul.f32 %v1364, %v1410
  %v1460 = vmul.f32 %v1367, %v1410
  %v1461 = vmul.f32 %v1370, %v1410
  %v1462 = vmul.f32 %v1373, %v1410
  %v1463 = vmul.f32 %v1376, %v1410
  %v1464 = vmul.f32 %v1379, %v1410
  %v1465 = vmul.f32 %v1382, %v1410
  %v1466 = vmul.f32 %v1385, %v1410
  %v1467 = vmul.f32 %v1388, %v1410
  %v1468 = vmul.f32 %v1391, %v1410
  %v1469 = vmul.f32 %v1394, %v1410
  %v1470 = vmul.f32 %v1397, %v1410
  %v1471 = vmul.f32 %v1400, %v1410
  %v1472 = vmul.f32 %v1403, %v1410
  %v1473 = vmul.f32 %v1406, %v1410
  %v1474 = vmul.f32 %v1409, %v1410
  %v1475 = vsub.f32 %v964, %v1411
  %v1476 = vsub.f32 %v967, %v1412
  %v1477 = vsub.f32 %v972, %v1413
  %v1478 = vsub.f32 %v975, %v1414
  %v1479 = vsub.f32 %v980, %v1415
  %v1480 = vsub.f32 %v983, %v1416
  %v1481 = vsub.f32 %v988, %v1417
  %v1482 = vsub.f32 %v991, %v1418
  %v1483 = vsub.f32 %v996, %v1419
  %v1484 = vsub.f32 %v999, %v1420
  %v1485 = vsub.f32 %v1004, %v1421
  %v1486 = vsub.f32 %v1007, %v1422
  %v1487 = vsub.f32 %v1012, %v1423
  %v1488 = vsub.f32 %v1015, %v1424
  %v1489 = vsub.f32 %v1020, %v1425
  %v1490 = vsub.f32 %v1023, %v1426
  %v1491 = vsub.f32 %v1028, %v1427
  %v1492 = vsub.f32 %v1031, %v1428
  %v1493 = vsub.f32 %v1036, %v1429
  %v1494 = vsub.f32 %v1039, %v1430
  %v1495 = vsub.f32 %v1044, %v1431
  %v1496 = vsub.f32 %v1047, %v1432
  %v1497 = vsub.f32 %v1052, %v1433
  %v1498 = vsub.f32 %v1055, %v1434
  %v1499 = vsub.f32 %v1060, %v1435
  %v1500 = vsub.f32 %v1063, %v1436
  %v1501 = vsub.f32 %v1068, %v1437
  %v1502 = vsub.f32 %v1071, %v1438
  %v1503 = vsub.f32 %v1076, %v1439
  %v1504 = vsub.f32 %v1079, %v1440
  %v1505 = vsub.f32 %v1084, %v1441
  %v1506 = vsub.f32 %v1087, %v1442
  %v1507 = vsub.f32 %v1092, %v1443
  %v1508 = vsub.f32 %v1095, %v1444
  %v1509 = vsub.f32 %v1100, %v1445
  %v1510 = vsub.f32 %v1103, %v1446
  %v1511 = vsub.f32 %v1108, %v1447
  %v1512 = vsub.f32 %v1111, %v1448
  %v1513 = vsub.f32 %v1116, %v1449
  %v1514 = vsub.f32 %v1119, %v1450
  %v1515 = vsub.f32 %v1124, %v1451
  %v1516 = vsub.f32 %v1127, %v1452
  %v1517 = vsub.f32 %v1132, %v1453
  %v1518 = vsub.f32 %v1135, %v1454
  %v1519 = vsub.f32 %v1140, %v1455
  %v1520 = vsub.f32 %v1143, %v1456
  %v1521 = vsub.f32 %v1148, %v1457
  %v1522 = vsub.f32 %v1151, %v1458
  %v1523 = vsub.f32 %v1156, %v1459
  %v1524 = vsub.f32 %v1159, %v1460
  %v1525 = vsub.f32 %v1164, %v1461
  %v1526 = vsub.f32 %v1167, %v1462
  %v1527 = vsub.f32 %v1172, %v1463
  %v1528 = vsub.f32 %v1175, %v1464
  %v1529 = vsub.f32 %v1180, %v1465
  %v1530 = vsub.f32 %v1183, %v1466
  %v1531 = vsub.f32 %v1188, %v1467
  %v1532 = vsub.f32 %v1191, %v1468
  %v1533 = vsub.f32 %v1196, %v1469
  %v1534 = vsub.f32 %v1199, %v1470
  %v1535 = vsub.f32 %v1204, %v1471
  %v1536 = vsub.f32 %v1207, %v1472
  %v1537 = vsub.f32 %v1212, %v1473
  %v1538 = vsub.f32 %v1215, %v1474
  %v1539 = vmul.f32 %v1475, %v1475
  %v1540 = vmul.f32 %v1476, %v1476
  %v1541 = vmul.f32 %v1477, %v1477
  %v1542 = vmul.f32 %v1478, %v1478
  %v1543 = vmul.f32 %v1479, %v1479
  %v1544 = vmul.f32 %v1480, %v1480
  %v1545 = vmul.f32 %v1481, %v1481
  %v1546 = vmul.f32 %v1482, %v1482
  %v1547 = vmul.f32 %v1483, %v1483
  %v1548 = vmul.f32 %v1484, %v1484
  %v1549 = vmul.f32 %v1485, %v1485
  %v1550 = vmul.f32 %v1486, %v1486
  %v1551 = vmul.f32 %v1487, %v1487
  %v1552 = vmul.f32 %v1488, %v1488
  %v1553 = vmul.f32 %v1489, %v1489
  %v1554 = vmul.f32 %v1490, %v1490
  %v1555 = vmul.f32 %v1491, %v1491
  %v1556 = vmul.f32 %v1492, %v1492
  %v1557 = vmul.f32 %v1493, %v1493
  %v1558 = vmul.f32 %v1494, %v1494
  %v1559 = vmul.f32 %v1495, %v1495
  %v1560 = vmul.f32 %v1496, %v1496
  %v1561 = vmul.f32 %v1497, %v1497
  %v1562 = vmul.f32 %v1498, %v1498
  %v1563 = vmul.f32 %v1499, %v1499
  %v1564 = vmul.f32 %v1500, %v1500
  %v1565 = vmul.f32 %v1501, %v1501
  %v1566 = vmul.f32 %v1502, %v1502
  %v1567 = vmul.f32 %v1503, %v1503
  %v1568 = vmul.f32 %v1504, %v1504
  %v1569 = vmul.f32 %v1505, %v1505
  %v1570 = vmul.f32 %v1506, %v1506
  %v1571 = vmul.f32 %v1507, %v1507
  %v1572 = vmul.f32 %v1508, %v1508
  %v1573 = vmul.f32 %v1509, %v1509
  %v1574 = vmul.f32 %v1510, %v1510
  %v1575 = vmul.f32 %v1511, %v1511
  %v1576 = vmul.f32 %v1512, %v1512
  %v1577 = vmul.f32 %v1513, %v1513
  %v1578 = vmul.f32 %v1514, %v1514
  %v1579 = vmul.f32 %v1515, %v1515
  %v1580 = vmul.f32 %v1516, %v1516
  %v1581 = vmul.f32 %v1517, %v1517
  %v1582 = vmul.f32 %v1518, %v1518
  %v1583 = vmul.f32 %v1519, %v1519
  %v1584 = vmul.f32 %v1520, %v1520
  %v1585 = vmul.f32 %v1521, %v1521
  %v1586 = vmul.f32 %v1522, %v1522
  %v1587 = vmul.f32 %v1523, %v1523
  %v1588 = vmul.f32 %v1524, %v1524
  %v1589 = vmul.f32 %v1525, %v1525
  %v1590 = vmul.f32 %v1526, %v1526
  %v1591 = vmul.f32 %v1527, %v1527
  %v1592 = vmul.f32 %v1528, %v1528
  %v1593 = vmul.f32 %v1529, %v1529
  %v1594 = vmul.f32 %v1530, %v1530
  %v1595 = vmul.f32 %v1531, %v1531
  %v1596 = vmul.f32 %v1532, %v1532
  %v1597 = vmul.f32 %v1533, %v1533
  %v1598 = vmul.f32 %v1534, %v1534
  %v1599 = vmul.f32 %v1535, %v1535
  %v1600 = vmul.f32 %v1536, %v1536
  %v1601 = vmul.f32 %v1537, %v1537
  %v1602 = vmul.f32 %v1538, %v1538
  %v1603 = vsel %vm159, %v1539, 0.0
  %1604 = vadd.xlane.f32.xlu0 %v1603
  %v1605 = vpop.xlane.xlu0 %1604
  %v1606 = vsel %vm159, %v1540, 0.0
  %1607 = vadd.xlane.f32.xlu0 %v1606
  %v1608 = vpop.xlane.xlu0 %1607
  %v1609 = vsel %vm159, %v1541, 0.0
  %1610 = vadd.xlane.f32.xlu0 %v1609
  %v1611 = vpop.xlane.xlu0 %1610
  %v1612 = vsel %vm159, %v1542, 0.0
  %1613 = vadd.xlane.f32.xlu0 %v1612
  %v1614 = vpop.xlane.xlu0 %1613
  %v1615 = vsel %vm159, %v1543, 0.0
  %1616 = vadd.xlane.f32.xlu0 %v1615
  %v1617 = vpop.xlane.xlu0 %1616
  %v1618 = vsel %vm159, %v1544, 0.0
  %1619 = vadd.xlane.f32.xlu0 %v1618
  %v1620 = vpop.xlane.xlu0 %1619
  %v1621 = vsel %vm159, %v1545, 0.0
  %1622 = vadd.xlane.f32.xlu0 %v1621
  %v1623 = vpop.xlane.xlu0 %1622
  %v1624 = vsel %vm159, %v1546, 0.0
  %1625 = vadd.xlane.f32.xlu0 %v1624
  %v1626 = vpop.xlane.xlu0 %1625
  %v1627 = vsel %vm159, %v1547, 0.0
  %1628 = vadd.xlane.f32.xlu0 %v1627
  %v1629 = vpop.xlane.xlu0 %1628
  %v1630 = vsel %vm159, %v1548, 0.0
  %1631 = vadd.xlane.f32.xlu0 %v1630
  %v1632 = vpop.xlane.xlu0 %1631
  %v1633 = vsel %vm159, %v1549, 0.0
  %1634 = vadd.xlane.f32.xlu0 %v1633
  %v1635 = vpop.xlane.xlu0 %1634
  %v1636 = vsel %vm159, %v1550, 0.0
  %1637 = vadd.xlane.f32.xlu0 %v1636
  %v1638 = vpop.xlane.xlu0 %1637
  %v1639 = vsel %vm159, %v1551, 0.0
  %1640 = vadd.xlane.f32.xlu0 %v1639
  %v1641 = vpop.xlane.xlu0 %1640
  %v1642 = vsel %vm159, %v1552, 0.0
  %1643 = vadd.xlane.f32.xlu0 %v1642
  %v1644 = vpop.xlane.xlu0 %1643
  %v1645 = vsel %vm159, %v1553, 0.0
  %1646 = vadd.xlane.f32.xlu0 %v1645
  %v1647 = vpop.xlane.xlu0 %1646
  %v1648 = vsel %vm159, %v1554, 0.0
  %1649 = vadd.xlane.f32.xlu0 %v1648
  %v1650 = vpop.xlane.xlu0 %1649
  %v1651 = vsel %vm159, %v1555, 0.0
  %1652 = vadd.xlane.f32.xlu0 %v1651
  %v1653 = vpop.xlane.xlu0 %1652
  %v1654 = vsel %vm159, %v1556, 0.0
  %1655 = vadd.xlane.f32.xlu0 %v1654
  %v1656 = vpop.xlane.xlu0 %1655
  %v1657 = vsel %vm159, %v1557, 0.0
  %1658 = vadd.xlane.f32.xlu0 %v1657
  %v1659 = vpop.xlane.xlu0 %1658
  %v1660 = vsel %vm159, %v1558, 0.0
  %1661 = vadd.xlane.f32.xlu0 %v1660
  %v1662 = vpop.xlane.xlu0 %1661
  %v1663 = vsel %vm159, %v1559, 0.0
  %1664 = vadd.xlane.f32.xlu0 %v1663
  %v1665 = vpop.xlane.xlu0 %1664
  %v1666 = vsel %vm159, %v1560, 0.0
  %1667 = vadd.xlane.f32.xlu0 %v1666
  %v1668 = vpop.xlane.xlu0 %1667
  %v1669 = vsel %vm159, %v1561, 0.0
  %1670 = vadd.xlane.f32.xlu0 %v1669
  %v1671 = vpop.xlane.xlu0 %1670
  %v1672 = vsel %vm159, %v1562, 0.0
  %1673 = vadd.xlane.f32.xlu0 %v1672
  %v1674 = vpop.xlane.xlu0 %1673
  %v1675 = vsel %vm159, %v1563, 0.0
  %1676 = vadd.xlane.f32.xlu0 %v1675
  %v1677 = vpop.xlane.xlu0 %1676
  %v1678 = vsel %vm159, %v1564, 0.0
  %1679 = vadd.xlane.f32.xlu0 %v1678
  %v1680 = vpop.xlane.xlu0 %1679
  %v1681 = vsel %vm159, %v1565, 0.0
  %1682 = vadd.xlane.f32.xlu0 %v1681
  %v1683 = vpop.xlane.xlu0 %1682
  %v1684 = vsel %vm159, %v1566, 0.0
  %1685 = vadd.xlane.f32.xlu0 %v1684
  %v1686 = vpop.xlane.xlu0 %1685
  %v1687 = vsel %vm159, %v1567, 0.0
  %1688 = vadd.xlane.f32.xlu0 %v1687
  %v1689 = vpop.xlane.xlu0 %1688
  %v1690 = vsel %vm159, %v1568, 0.0
  %1691 = vadd.xlane.f32.xlu0 %v1690
  %v1692 = vpop.xlane.xlu0 %1691
  %v1693 = vsel %vm159, %v1569, 0.0
  %1694 = vadd.xlane.f32.xlu0 %v1693
  %v1695 = vpop.xlane.xlu0 %1694
  %v1696 = vsel %vm159, %v1570, 0.0
  %1697 = vadd.xlane.f32.xlu0 %v1696
  %v1698 = vpop.xlane.xlu0 %1697
  %v1699 = vsel %vm159, %v1571, 0.0
  %1700 = vadd.xlane.f32.xlu0 %v1699
  %v1701 = vpop.xlane.xlu0 %1700
  %v1702 = vsel %vm159, %v1572, 0.0
  %1703 = vadd.xlane.f32.xlu0 %v1702
  %v1704 = vpop.xlane.xlu0 %1703
  %v1705 = vsel %vm159, %v1573, 0.0
  %1706 = vadd.xlane.f32.xlu0 %v1705
  %v1707 = vpop.xlane.xlu0 %1706
  %v1708 = vsel %vm159, %v1574, 0.0
  %1709 = vadd.xlane.f32.xlu0 %v1708
  %v1710 = vpop.xlane.xlu0 %1709
  %v1711 = vsel %vm159, %v1575, 0.0
  %1712 = vadd.xlane.f32.xlu0 %v1711
  %v1713 = vpop.xlane.xlu0 %1712
  %v1714 = vsel %vm159, %v1576, 0.0
  %1715 = vadd.xlane.f32.xlu0 %v1714
  %v1716 = vpop.xlane.xlu0 %1715
  %v1717 = vsel %vm159, %v1577, 0.0
  %1718 = vadd.xlane.f32.xlu0 %v1717
  %v1719 = vpop.xlane.xlu0 %1718
  %v1720 = vsel %vm159, %v1578, 0.0
  %1721 = vadd.xlane.f32.xlu0 %v1720
  %v1722 = vpop.xlane.xlu0 %1721
  %v1723 = vsel %vm159, %v1579, 0.0
  %1724 = vadd.xlane.f32.xlu0 %v1723
  %v1725 = vpop.xlane.xlu0 %1724
  %v1726 = vsel %vm159, %v1580, 0.0
  %1727 = vadd.xlane.f32.xlu0 %v1726
  %v1728 = vpop.xlane.xlu0 %1727
  %v1729 = vsel %vm159, %v1581, 0.0
  %1730 = vadd.xlane.f32.xlu0 %v1729
  %v1731 = vpop.xlane.xlu0 %1730
  %v1732 = vsel %vm159, %v1582, 0.0
  %1733 = vadd.xlane.f32.xlu0 %v1732
  %v1734 = vpop.xlane.xlu0 %1733
  %v1735 = vsel %vm159, %v1583, 0.0
  %1736 = vadd.xlane.f32.xlu0 %v1735
  %v1737 = vpop.xlane.xlu0 %1736
  %v1738 = vsel %vm159, %v1584, 0.0
  %1739 = vadd.xlane.f32.xlu0 %v1738
  %v1740 = vpop.xlane.xlu0 %1739
  %v1741 = vsel %vm159, %v1585, 0.0
  %1742 = vadd.xlane.f32.xlu0 %v1741
  %v1743 = vpop.xlane.xlu0 %1742
  %v1744 = vsel %vm159, %v1586, 0.0
  %1745 = vadd.xlane.f32.xlu0 %v1744
  %v1746 = vpop.xlane.xlu0 %1745
  %v1747 = vsel %vm159, %v1587, 0.0
  %1748 = vadd.xlane.f32.xlu0 %v1747
  %v1749 = vpop.xlane.xlu0 %1748
  %v1750 = vsel %vm159, %v1588, 0.0
  %1751 = vadd.xlane.f32.xlu0 %v1750
  %v1752 = vpop.xlane.xlu0 %1751
  %v1753 = vsel %vm159, %v1589, 0.0
  %1754 = vadd.xlane.f32.xlu0 %v1753
  %v1755 = vpop.xlane.xlu0 %1754
  %v1756 = vsel %vm159, %v1590, 0.0
  %1757 = vadd.xlane.f32.xlu0 %v1756
  %v1758 = vpop.xlane.xlu0 %1757
  %v1759 = vsel %vm159, %v1591, 0.0
  %1760 = vadd.xlane.f32.xlu0 %v1759
  %v1761 = vpop.xlane.xlu0 %1760
  %v1762 = vsel %vm159, %v1592, 0.0
  %1763 = vadd.xlane.f32.xlu0 %v1762
  %v1764 = vpop.xlane.xlu0 %1763
  %v1765 = vsel %vm159, %v1593, 0.0
  %1766 = vadd.xlane.f32.xlu0 %v1765
  %v1767 = vpop.xlane.xlu0 %1766
  %v1768 = vsel %vm159, %v1594, 0.0
  %1769 = vadd.xlane.f32.xlu0 %v1768
  %v1770 = vpop.xlane.xlu0 %1769
  %v1771 = vsel %vm159, %v1595, 0.0
  %1772 = vadd.xlane.f32.xlu0 %v1771
  %v1773 = vpop.xlane.xlu0 %1772
  %v1774 = vsel %vm159, %v1596, 0.0
  %1775 = vadd.xlane.f32.xlu0 %v1774
  %v1776 = vpop.xlane.xlu0 %1775
  %v1777 = vsel %vm159, %v1597, 0.0
  %1778 = vadd.xlane.f32.xlu0 %v1777
  %v1779 = vpop.xlane.xlu0 %1778
  %v1780 = vsel %vm159, %v1598, 0.0
  %1781 = vadd.xlane.f32.xlu0 %v1780
  %v1782 = vpop.xlane.xlu0 %1781
  %v1783 = vsel %vm159, %v1599, 0.0
  %1784 = vadd.xlane.f32.xlu0 %v1783
  %v1785 = vpop.xlane.xlu0 %1784
  %v1786 = vsel %vm159, %v1600, 0.0
  %1787 = vadd.xlane.f32.xlu0 %v1786
  %v1788 = vpop.xlane.xlu0 %1787
  %v1789 = vsel %vm159, %v1601, 0.0
  %1790 = vadd.xlane.f32.xlu0 %v1789
  %v1791 = vpop.xlane.xlu0 %1790
  %v1792 = vsel %vm159, %v1602, 0.0
  %1793 = vadd.xlane.f32.xlu0 %v1792
  %v1794 = vpop.xlane.xlu0 %1793
  %v1795 = vmul.f32 %v1605, %v1410
  %v1796 = vmul.f32 %v1608, %v1410
  %v1797 = vmul.f32 %v1611, %v1410
  %v1798 = vmul.f32 %v1614, %v1410
  %v1799 = vmul.f32 %v1617, %v1410
  %v1800 = vmul.f32 %v1620, %v1410
  %v1801 = vmul.f32 %v1623, %v1410
  %v1802 = vmul.f32 %v1626, %v1410
  %v1803 = vmul.f32 %v1629, %v1410
  %v1804 = vmul.f32 %v1632, %v1410
  %v1805 = vmul.f32 %v1635, %v1410
  %v1806 = vmul.f32 %v1638, %v1410
  %v1807 = vmul.f32 %v1641, %v1410
  %v1808 = vmul.f32 %v1644, %v1410
  %v1809 = vmul.f32 %v1647, %v1410
  %v1810 = vmul.f32 %v1650, %v1410
  %v1811 = vmul.f32 %v1653, %v1410
  %v1812 = vmul.f32 %v1656, %v1410
  %v1813 = vmul.f32 %v1659, %v1410
  %v1814 = vmul.f32 %v1662, %v1410
  %v1815 = vmul.f32 %v1665, %v1410
  %v1816 = vmul.f32 %v1668, %v1410
  %v1817 = vmul.f32 %v1671, %v1410
  %v1818 = vmul.f32 %v1674, %v1410
  %v1819 = vmul.f32 %v1677, %v1410
  %v1820 = vmul.f32 %v1680, %v1410
  %v1821 = vmul.f32 %v1683, %v1410
  %v1822 = vmul.f32 %v1686, %v1410
  %v1823 = vmul.f32 %v1689, %v1410
  %v1824 = vmul.f32 %v1692, %v1410
  %v1825 = vmul.f32 %v1695, %v1410
  %v1826 = vmul.f32 %v1698, %v1410
  %v1827 = vmul.f32 %v1701, %v1410
  %v1828 = vmul.f32 %v1704, %v1410
  %v1829 = vmul.f32 %v1707, %v1410
  %v1830 = vmul.f32 %v1710, %v1410
  %v1831 = vmul.f32 %v1713, %v1410
  %v1832 = vmul.f32 %v1716, %v1410
  %v1833 = vmul.f32 %v1719, %v1410
  %v1834 = vmul.f32 %v1722, %v1410
  %v1835 = vmul.f32 %v1725, %v1410
  %v1836 = vmul.f32 %v1728, %v1410
  %v1837 = vmul.f32 %v1731, %v1410
  %v1838 = vmul.f32 %v1734, %v1410
  %v1839 = vmul.f32 %v1737, %v1410
  %v1840 = vmul.f32 %v1740, %v1410
  %v1841 = vmul.f32 %v1743, %v1410
  %v1842 = vmul.f32 %v1746, %v1410
  %v1843 = vmul.f32 %v1749, %v1410
  %v1844 = vmul.f32 %v1752, %v1410
  %v1845 = vmul.f32 %v1755, %v1410
  %v1846 = vmul.f32 %v1758, %v1410
  %v1847 = vmul.f32 %v1761, %v1410
  %v1848 = vmul.f32 %v1764, %v1410
  %v1849 = vmul.f32 %v1767, %v1410
  %v1850 = vmul.f32 %v1770, %v1410
  %v1851 = vmul.f32 %v1773, %v1410
  %v1852 = vmul.f32 %v1776, %v1410
  %v1853 = vmul.f32 %v1779, %v1410
  %v1854 = vmul.f32 %v1782, %v1410
  %v1855 = vmul.f32 %v1785, %v1410
  %v1856 = vmul.f32 %v1788, %v1410
  %v1857 = vmul.f32 %v1791, %v1410
  %v1858 = vmul.f32 %v1794, %v1410
  %v1859 = vadd.f32 %v1795, 1e-05
  %v1860 = vadd.f32 %v1796, 1e-05
  %v1861 = vadd.f32 %v1797, 1e-05
  %v1862 = vadd.f32 %v1798, 1e-05
  %v1863 = vadd.f32 %v1799, 1e-05
  %v1864 = vadd.f32 %v1800, 1e-05
  %v1865 = vadd.f32 %v1801, 1e-05
  %v1866 = vadd.f32 %v1802, 1e-05
  %v1867 = vadd.f32 %v1803, 1e-05
  %v1868 = vadd.f32 %v1804, 1e-05
  %v1869 = vadd.f32 %v1805, 1e-05
  %v1870 = vadd.f32 %v1806, 1e-05
  %v1871 = vadd.f32 %v1807, 1e-05
  %v1872 = vadd.f32 %v1808, 1e-05
  %v1873 = vadd.f32 %v1809, 1e-05
  %v1874 = vadd.f32 %v1810, 1e-05
  %v1875 = vadd.f32 %v1811, 1e-05
  %v1876 = vadd.f32 %v1812, 1e-05
  %v1877 = vadd.f32 %v1813, 1e-05
  %v1878 = vadd.f32 %v1814, 1e-05
  %v1879 = vadd.f32 %v1815, 1e-05
  %v1880 = vadd.f32 %v1816, 1e-05
  %v1881 = vadd.f32 %v1817, 1e-05
  %v1882 = vadd.f32 %v1818, 1e-05
  %v1883 = vadd.f32 %v1819, 1e-05
  %v1884 = vadd.f32 %v1820, 1e-05
  %v1885 = vadd.f32 %v1821, 1e-05
  %v1886 = vadd.f32 %v1822, 1e-05
  %v1887 = vadd.f32 %v1823, 1e-05
  %v1888 = vadd.f32 %v1824, 1e-05
  %v1889 = vadd.f32 %v1825, 1e-05
  %v1890 = vadd.f32 %v1826, 1e-05
  %v1891 = vadd.f32 %v1827, 1e-05
  %v1892 = vadd.f32 %v1828, 1e-05
  %v1893 = vadd.f32 %v1829, 1e-05
  %v1894 = vadd.f32 %v1830, 1e-05
  %v1895 = vadd.f32 %v1831, 1e-05
  %v1896 = vadd.f32 %v1832, 1e-05
  %v1897 = vadd.f32 %v1833, 1e-05
  %v1898 = vadd.f32 %v1834, 1e-05
  %v1899 = vadd.f32 %v1835, 1e-05
  %v1900 = vadd.f32 %v1836, 1e-05
  %v1901 = vadd.f32 %v1837, 1e-05
  %v1902 = vadd.f32 %v1838, 1e-05
  %v1903 = vadd.f32 %v1839, 1e-05
  %v1904 = vadd.f32 %v1840, 1e-05
  %v1905 = vadd.f32 %v1841, 1e-05
  %v1906 = vadd.f32 %v1842, 1e-05
  %v1907 = vadd.f32 %v1843, 1e-05
  %v1908 = vadd.f32 %v1844, 1e-05
  %v1909 = vadd.f32 %v1845, 1e-05
  %v1910 = vadd.f32 %v1846, 1e-05
  %v1911 = vadd.f32 %v1847, 1e-05
  %v1912 = vadd.f32 %v1848, 1e-05
  %v1913 = vadd.f32 %v1849, 1e-05
  %v1914 = vadd.f32 %v1850, 1e-05
  %v1915 = vadd.f32 %v1851, 1e-05
  %v1916 = vadd.f32 %v1852, 1e-05
  %v1917 = vadd.f32 %v1853, 1e-05
  %v1918 = vadd.f32 %v1854, 1e-05
  %v1919 = vadd.f32 %v1855, 1e-05
  %v1920 = vadd.f32 %v1856, 1e-05
  %v1921 = vadd.f32 %v1857, 1e-05
  %v1922 = vadd.f32 %v1858, 1e-05
  %v1923 = vrsqrt.pop %v1859
  %v1924 = vrsqrt.pop %v1860
  %v1925 = vrsqrt.pop %v1861
  %v1926 = vrsqrt.pop %v1862
  %v1927 = vrsqrt.pop %v1863
  %v1928 = vrsqrt.pop %v1864
  %v1929 = vrsqrt.pop %v1865
  %v1930 = vrsqrt.pop %v1866
  %v1931 = vrsqrt.pop %v1867
  %v1932 = vrsqrt.pop %v1868
  %v1933 = vrsqrt.pop %v1869
  %v1934 = vrsqrt.pop %v1870
  %v1935 = vrsqrt.pop %v1871
  %v1936 = vrsqrt.pop %v1872
  %v1937 = vrsqrt.pop %v1873
  %v1938 = vrsqrt.pop %v1874
  %v1939 = vrsqrt.pop %v1875
  %v1940 = vrsqrt.pop %v1876
  %v1941 = vrsqrt.pop %v1877
  %v1942 = vrsqrt.pop %v1878
  %v1943 = vrsqrt.pop %v1879
  %v1944 = vrsqrt.pop %v1880
  %v1945 = vrsqrt.pop %v1881
  %v1946 = vrsqrt.pop %v1882
  %v1947 = vrsqrt.pop %v1883
  %v1948 = vrsqrt.pop %v1884
  %v1949 = vrsqrt.pop %v1885
  %v1950 = vrsqrt.pop %v1886
  %v1951 = vrsqrt.pop %v1887
  %v1952 = vrsqrt.pop %v1888
  %v1953 = vrsqrt.pop %v1889
  %v1954 = vrsqrt.pop %v1890
  %v1955 = vrsqrt.pop %v1891
  %v1956 = vrsqrt.pop %v1892
  %v1957 = vrsqrt.pop %v1893
  %v1958 = vrsqrt.pop %v1894
  %v1959 = vrsqrt.pop %v1895
  %v1960 = vrsqrt.pop %v1896
  %v1961 = vrsqrt.pop %v1897
  %v1962 = vrsqrt.pop %v1898
  %v1963 = vrsqrt.pop %v1899
  %v1964 = vrsqrt.pop %v1900
  %v1965 = vrsqrt.pop %v1901
  %v1966 = vrsqrt.pop %v1902
  %v1967 = vrsqrt.pop %v1903
  %v1968 = vrsqrt.pop %v1904
  %v1969 = vrsqrt.pop %v1905
  %v1970 = vrsqrt.pop %v1906
  %v1971 = vrsqrt.pop %v1907
  %v1972 = vrsqrt.pop %v1908
  %v1973 = vrsqrt.pop %v1909
  %v1974 = vrsqrt.pop %v1910
  %v1975 = vrsqrt.pop %v1911
  %v1976 = vrsqrt.pop %v1912
  %v1977 = vrsqrt.pop %v1913
  %v1978 = vrsqrt.pop %v1914
  %v1979 = vrsqrt.pop %v1915
  %v1980 = vrsqrt.pop %v1916
  %v1981 = vrsqrt.pop %v1917
  %v1982 = vrsqrt.pop %v1918
  %v1983 = vrsqrt.pop %v1919
  %v1984 = vrsqrt.pop %v1920
  %v1985 = vrsqrt.pop %v1921
  %v1986 = vrsqrt.pop %v1922
  %v1987 = vmul.f32 %v1475, %v1923
  %v1988 = vmul.f32 %v1476, %v1924
  %v1989 = vmul.f32 %v1477, %v1925
  %v1990 = vmul.f32 %v1478, %v1926
  %v1991 = vmul.f32 %v1479, %v1927
  %v1992 = vmul.f32 %v1480, %v1928
  %v1993 = vmul.f32 %v1481, %v1929
  %v1994 = vmul.f32 %v1482, %v1930
  %v1995 = vmul.f32 %v1483, %v1931
  %v1996 = vmul.f32 %v1484, %v1932
  %v1997 = vmul.f32 %v1485, %v1933
  %v1998 = vmul.f32 %v1486, %v1934
  %v1999 = vmul.f32 %v1487, %v1935
  %v2000 = vmul.f32 %v1488, %v1936
  %v2001 = vmul.f32 %v1489, %v1937
  %v2002 = vmul.f32 %v1490, %v1938
  %v2003 = vmul.f32 %v1491, %v1939
  %v2004 = vmul.f32 %v1492, %v1940
  %v2005 = vmul.f32 %v1493, %v1941
  %v2006 = vmul.f32 %v1494, %v1942
  %v2007 = vmul.f32 %v1495, %v1943
  %v2008 = vmul.f32 %v1496, %v1944
  %v2009 = vmul.f32 %v1497, %v1945
  %v2010 = vmul.f32 %v1498, %v1946
  %v2011 = vmul.f32 %v1499, %v1947
  %v2012 = vmul.f32 %v1500, %v1948
  %v2013 = vmul.f32 %v1501, %v1949
  %v2014 = vmul.f32 %v1502, %v1950
  %v2015 = vmul.f32 %v1503, %v1951
  %v2016 = vmul.f32 %v1504, %v1952
  %v2017 = vmul.f32 %v1505, %v1953
  %v2018 = vmul.f32 %v1506, %v1954
  %v2019 = vmul.f32 %v1507, %v1955
  %v2020 = vmul.f32 %v1508, %v1956
  %v2021 = vmul.f32 %v1509, %v1957
  %v2022 = vmul.f32 %v1510, %v1958
  %v2023 = vmul.f32 %v1511, %v1959
  %v2024 = vmul.f32 %v1512, %v1960
  %v2025 = vmul.f32 %v1513, %v1961
  %v2026 = vmul.f32 %v1514, %v1962
  %v2027 = vmul.f32 %v1515, %v1963
  %v2028 = vmul.f32 %v1516, %v1964
  %v2029 = vmul.f32 %v1517, %v1965
  %v2030 = vmul.f32 %v1518, %v1966
  %v2031 = vmul.f32 %v1519, %v1967
  %v2032 = vmul.f32 %v1520, %v1968
  %v2033 = vmul.f32 %v1521, %v1969
  %v2034 = vmul.f32 %v1522, %v1970
  %v2035 = vmul.f32 %v1523, %v1971
  %v2036 = vmul.f32 %v1524, %v1972
  %v2037 = vmul.f32 %v1525, %v1973
  %v2038 = vmul.f32 %v1526, %v1974
  %v2039 = vmul.f32 %v1527, %v1975
  %v2040 = vmul.f32 %v1528, %v1976
  %v2041 = vmul.f32 %v1529, %v1977
  %v2042 = vmul.f32 %v1530, %v1978
  %v2043 = vmul.f32 %v1531, %v1979
  %v2044 = vmul.f32 %v1532, %v1980
  %v2045 = vmul.f32 %v1533, %v1981
  %v2046 = vmul.f32 %v1534, %v1982
  %v2047 = vmul.f32 %v1535, %v1983
  %v2048 = vmul.f32 %v1536, %v1984
  %v2049 = vmul.f32 %v1537, %v1985
  %v2050 = vmul.f32 %v1538, %v1986
  %2051 = vst.msk [vmem:[%s3] sm:$0xff] %vm159, %v1987
  %2052 = vst.msk [vmem:[%s3 + $0x8] sm:$0xff] %vm159, %v1988
  %2053 = vst.msk [vmem:[%s3 + $0x10] sm:$0xff] %vm159, %v1989
  %2054 = vst.msk [vmem:[%s3 + $0x18] sm:$0xff] %vm159, %v1990
  %2055 = vst.msk [vmem:[%s3 + $0x20] sm:$0xff] %vm159, %v1991
  %2056 = vst.msk [vmem:[%s3 + $0x28] sm:$0xff] %vm159, %v1992
  %2057 = vst.msk [vmem:[%s3 + $0x30] sm:$0xff] %vm159, %v1993
  %2058 = vst.msk [vmem:[%s3 + $0x38] sm:$0xff] %vm159, %v1994
  %2059 = vst.msk [vmem:[%s3 + $0x40] sm:$0xff] %vm159, %v1995
  %2060 = vst.msk [vmem:[%s3 + $0x48] sm:$0xff] %vm159, %v1996
  %2061 = vst.msk [vmem:[%s3 + $0x50] sm:$0xff] %vm159, %v1997
  %2062 = vst.msk [vmem:[%s3 + $0x58] sm:$0xff] %vm159, %v1998
  %2063 = vst.msk [vmem:[%s3 + $0x60] sm:$0xff] %vm159, %v1999
  %2064 = vst.msk [vmem:[%s3 + $0x68] sm:$0xff] %vm159, %v2000
  %2065 = vst.msk [vmem:[%s3 + $0x70] sm:$0xff] %vm159, %v2001
  %2066 = vst.msk [vmem:[%s3 + $0x78] sm:$0xff] %vm159, %v2002
  %2067 = vst.msk [vmem:[%s3 + $0x80] sm:$0xff] %vm159, %v2003
  %2068 = vst.msk [vmem:[%s3 + $0x88] sm:$0xff] %vm159, %v2004
  %2069 = vst.msk [vmem:[%s3 + $0x90] sm:$0xff] %vm159, %v2005
  %2070 = vst.msk [vmem:[%s3 + $0x98] sm:$0xff] %vm159, %v2006
  %2071 = vst.msk [vmem:[%s3 + $0xa0] sm:$0xff] %vm159, %v2007
  %2072 = vst.msk [vmem:[%s3 + $0xa8] sm:$0xff] %vm159, %v2008
  %2073 = vst.msk [vmem:[%s3 + $0xb0] sm:$0xff] %vm159, %v2009
  %2074 = vst.msk [vmem:[%s3 + $0xb8] sm:$0xff] %vm159, %v2010
  %2075 = vst.msk [vmem:[%s3 + $0xc0] sm:$0xff] %vm159, %v2011
  %2076 = vst.msk [vmem:[%s3 + $0xc8] sm:$0xff] %vm159, %v2012
  %2077 = vst.msk [vmem:[%s3 + $0xd0] sm:$0xff] %vm159, %v2013
  %2078 = vst.msk [vmem:[%s3 + $0xd8] sm:$0xff] %vm159, %v2014
  %2079 = vst.msk [vmem:[%s3 + $0xe0] sm:$0xff] %vm159, %v2015
  %2080 = vst.msk [vmem:[%s3 + $0xe8] sm:$0xff] %vm159, %v2016
  %2081 = vst.msk [vmem:[%s3 + $0xf0] sm:$0xff] %vm159, %v2017
  %2082 = vst.msk [vmem:[%s3 + $0xf8] sm:$0xff] %vm159, %v2018
  %2083 = vst.msk [vmem:[%s3 + $0x100] sm:$0xff] %vm159, %v2019
  %2084 = vst.msk [vmem:[%s3 + $0x108] sm:$0xff] %vm159, %v2020
  %2085 = vst.msk [vmem:[%s3 + $0x110] sm:$0xff] %vm159, %v2021
  %2086 = vst.msk [vmem:[%s3 + $0x118] sm:$0xff] %vm159, %v2022
  %2087 = vst.msk [vmem:[%s3 + $0x120] sm:$0xff] %vm159, %v2023
  %2088 = vst.msk [vmem:[%s3 + $0x128] sm:$0xff] %vm159, %v2024
  %2089 = vst.msk [vmem:[%s3 + $0x130] sm:$0xff] %vm159, %v2025
  %2090 = vst.msk [vmem:[%s3 + $0x138] sm:$0xff] %vm159, %v2026
  %2091 = vst.msk [vmem:[%s3 + $0x140] sm:$0xff] %vm159, %v2027
  %2092 = vst.msk [vmem:[%s3 + $0x148] sm:$0xff] %vm159, %v2028
  %2093 = vst.msk [vmem:[%s3 + $0x150] sm:$0xff] %vm159, %v2029
  %2094 = vst.msk [vmem:[%s3 + $0x158] sm:$0xff] %vm159, %v2030
  %2095 = vst.msk [vmem:[%s3 + $0x160] sm:$0xff] %vm159, %v2031
  %2096 = vst.msk [vmem:[%s3 + $0x168] sm:$0xff] %vm159, %v2032
  %2097 = vst.msk [vmem:[%s3 + $0x170] sm:$0xff] %vm159, %v2033
  %2098 = vst.msk [vmem:[%s3 + $0x178] sm:$0xff] %vm159, %v2034
  %2099 = vst.msk [vmem:[%s3 + $0x180] sm:$0xff] %vm159, %v2035
  %2100 = vst.msk [vmem:[%s3 + $0x188] sm:$0xff] %vm159, %v2036
  %2101 = vst.msk [vmem:[%s3 + $0x190] sm:$0xff] %vm159, %v2037
  %2102 = vst.msk [vmem:[%s3 + $0x198] sm:$0xff] %vm159, %v2038
  %2103 = vst.msk [vmem:[%s3 + $0x1a0] sm:$0xff] %vm159, %v2039
  %2104 = vst.msk [vmem:[%s3 + $0x1a8] sm:$0xff] %vm159, %v2040
  %2105 = vst.msk [vmem:[%s3 + $0x1b0] sm:$0xff] %vm159, %v2041
  %2106 = vst.msk [vmem:[%s3 + $0x1b8] sm:$0xff] %vm159, %v2042
  %2107 = vst.msk [vmem:[%s3 + $0x1c0] sm:$0xff] %vm159, %v2043
  %2108 = vst.msk [vmem:[%s3 + $0x1c8] sm:$0xff] %vm159, %v2044
  %2109 = vst.msk [vmem:[%s3 + $0x1d0] sm:$0xff] %vm159, %v2045
  %2110 = vst.msk [vmem:[%s3 + $0x1d8] sm:$0xff] %vm159, %v2046
  %2111 = vst.msk [vmem:[%s3 + $0x1e0] sm:$0xff] %vm159, %v2047
  %2112 = vst.msk [vmem:[%s3 + $0x1e8] sm:$0xff] %vm159, %v2048
  %2113 = vst.msk [vmem:[%s3 + $0x1f0] sm:$0xff] %vm159, %v2049
  %2114 = vst.msk [vmem:[%s3 + $0x1f8] sm:$0xff] %vm159, %v2050
  // Predicated region
  $region14: #{tpu_custom_call.1} parent=0 // pred_check
    _
  $region15: #{tpu_custom_call.1} parent=0 // pred_check_branch
    %2116 = sbr.rel (0) target = $region17
  $region16: #{tpu_custom_call.1} parent=0 // pred_region
    _
  $region17: #{tpu_custom_call.1} parent=0 // pred_fallthru
    _
  // Predicated region
  $region18: #{tpu_custom_call.1} parent=0 // pred_check
    _
  $region19: #{tpu_custom_call.1} parent=0 // pred_check_branch
    %2118 = sbr.rel (0) target = $region21
  $region20: #{tpu_custom_call.1} parent=0 // pred_region
    _
  $region21: #{tpu_custom_call.1} parent=0 // pred_fallthru
    _

</llo_original>
